<compile_context>
chip_gen: v7x
topology: tpu7x:2x2x1
jax: 0.10.0
libtpu: 0.0.40
codegen_flags: <defaults>
</compile_context>

<pallas_src>
import numpy as np
import jax
import jax.numpy as jnp
from jax import lax
from jax.experimental import pallas as pl
from jax.experimental.pallas import tpu as pltpu

HIDDEN = 5      # LSTM hidden size
CONV_OUT = 15   # Conv1d output channels
SUBLANE = 8     # f32 sublane tile


def bichrom_chrom_kernel(x_ref,        # (L*Bp, C)   flattened time-major input
                         wc_ref,       # (C, 15)     conv1d weight (transposed)
                         bc_ref,       # (1, 15)     conv1d bias
                         wih_ref,      # (15, 4H)    LSTM input->gates weight (transposed)
                         whh_ref,      # (H, 4H)     LSTM hidden->gates weight (transposed)
                         blstm_ref,    # (1, 4H)     LSTM bias (bias_ih + bias_hh)
                         wlin_ref,     # (H, 1)      Linear weight (transposed)
                         blin_ref,     # (1, 1)      Linear bias
                         out_ref,      # (Bp, 1)     output (padded batch)
                         gx_scratch):  # (L*Bp, 4H)  precomputed input contribution to gates
    LBp, _ = x_ref.shape
    Bp = out_ref.shape[0]
    L = LBp // Bp
    H = HIDDEN

    # ---- Hoisted out of the recurrence: conv(k=1) + ReLU + input projection + bias,
    #      all timesteps batched into two matmuls. ----
    xc = jnp.dot(x_ref[...], wc_ref[...], preferred_element_type=jnp.float32) + bc_ref[...]
    xc = jnp.maximum(xc, 0.0)                                             # (L*Bp, 15)
    gx_scratch[...] = (jnp.dot(xc, wih_ref[...], preferred_element_type=jnp.float32)
                       + blstm_ref[...])                                  # (L*Bp, 4H)

    whh = whh_ref[...]                                                    # (H, 4H), loaded once

    # ---- LSTM recurrence (PyTorch gate order: i, f, g, o), fully unrolled. ----
    h = jnp.zeros((Bp, H), jnp.float32)
    c = jnp.zeros((Bp, H), jnp.float32)

    for t in range(L):                                   # static trip count -> static slices
        gates = gx_scratch[pl.ds(t * Bp, Bp), :]         # (Bp, 4H), sublane-aligned load
        # h @ W_hh on the VPU: 5 broadcast multiply-adds instead of an MXU push/pop
        # sitting on the serial critical path.
        for k in range(H):
            gates = gates + h[:, k:k + 1] * whh[k:k + 1, :]
        # Two whole-vreg EUP pushes per step, then lane-slice the gates.
        sig_all = jax.nn.sigmoid(gates)
        tanh_all = jnp.tanh(gates)
        i = sig_all[:, 0 * H:1 * H]
        f = sig_all[:, 1 * H:2 * H]
        g = tanh_all[:, 2 * H:3 * H]
        o = sig_all[:, 3 * H:4 * H]
        c = f * c + i * g
        h = o * jnp.tanh(c)

    # ---- Linear(5 -> 1) + Tanh (once, off the recurrence) ----
    y = jnp.dot(h, wlin_ref[...], preferred_element_type=jnp.float32) + blin_ref[...]
    out_ref[...] = jnp.tanh(y)


def bichrom_chrom_forward(x_ncl, params):
    """x_ncl: (B, C, L) float32 — PyTorch NCL layout.  Returns (B, 1)."""
    B, C, L = x_ncl.shape
    Bp = int(np.ceil(B / SUBLANE)) * SUBLANE             # pad batch (sublane axis) to 8

    # Layout plumbing done in the wrapper (outside the kernel): time-major,
    # zero-padded batch, flattened to a single matmul-shaped slab.
    x_lbc = jnp.transpose(x_ncl, (2, 0, 1)).astype(jnp.float32)           # (L, B, C)
    x_pad = jnp.zeros((L, Bp, C), jnp.float32).at[:, :B, :].set(x_lbc)    # (L, Bp, C)
    x_flat = x_pad.reshape(L * Bp, C)                                     # (L*Bp, C)

    wc, bc, wih, whh, blstm, wlin, blin = params
    vmem = pl.BlockSpec(memory_space=pltpu.MemorySpace.VMEM)

    out = pl.pallas_call(
        bichrom_chrom_kernel,
        out_shape=jax.ShapeDtypeStruct((Bp, 1), jnp.float32),
        in_specs=[vmem] * 8,
        out_specs=vmem,
        scratch_shapes=[pltpu.VMEM((L * Bp, 4 * HIDDEN), jnp.float32)],
    )(x_flat, wc, bc, wih, whh, blstm, wlin, blin)

    return out[:B]                                        # drop padded batch rows
    # TODO(synk): for large batches, add a parallel grid axis over batch tiles
    # (dimension_semantics=("parallel",)) to use both TensorCores on v7x.


def make_params(key, no_of_chromatin_tracks):
    """Deterministic synthetic parameters with the same shapes as the PyTorch module."""
    C, H = no_of_chromatin_tracks, HIDDEN
    ks = jax.random.split(key, 9)
    u = lambda k, shp, scale: jax.random.uniform(k, shp, jnp.float32, -scale, scale)

    # Conv1d(C, 15, 1): weight (15, C, 1), bias (15,)
    k_conv = 1.0 / np.sqrt(C)
    conv_w = u(ks[0], (CONV_OUT, C), k_conv)          # kernel dim of size 1 squeezed
    conv_b = u(ks[1], (CONV_OUT,), k_conv)

    # LSTM(15, 5): weight_ih (4H, 15), weight_hh (4H, H), bias_ih (4H,), bias_hh (4H,)
    k_lstm = 1.0 / np.sqrt(H)
    w_ih = u(ks[2], (4 * H, CONV_OUT), k_lstm)
    w_hh = u(ks[3], (4 * H, H), k_lstm)
    b_ih = u(ks[4], (4 * H,), k_lstm)
    b_hh = u(ks[5], (4 * H,), k_lstm)

    # Linear(5, 1): weight (1, H), bias (1,)
    k_lin = 1.0 / np.sqrt(H)
    lin_w = u(ks[6], (1, H), k_lin)
    lin_b = u(ks[7], (1,), k_lin)

    # Pack into kernel-friendly (transposed, 2-D) forms.
    params = (
        conv_w.T,                          # (C, 15)
        conv_b.reshape(1, CONV_OUT),       # (1, 15)
        w_ih.T,                            # (15, 4H)
        w_hh.T,                            # (H, 4H)
        (b_ih + b_hh).reshape(1, 4 * H),   # (1, 4H)
        lin_w.T,                           # (H, 1)
        lin_b.reshape(1, 1),               # (1, 1)
    )
    return params


def reference_forward(x_ncl, params):
    """Plain-JAX reference mirroring the PyTorch forward, for verification."""
    wc, bc, wih, whh, blstm, wlin, blin = params
    B, C, L = x_ncl.shape
    H = HIDDEN
    xc = jnp.einsum('bcl,co->blo', x_ncl, wc) + bc[0]      # (B, L, 15)
    xc = jnp.maximum(xc, 0.0)
    h = jnp.zeros((B, H), jnp.float32)
    c = jnp.zeros((B, H), jnp.float32)
    for t in range(L):
        gates = xc[:, t, :] @ wih + h @ whh + blstm
        i = jax.nn.sigmoid(gates[:, 0 * H:1 * H])
        f = jax.nn.sigmoid(gates[:, 1 * H:2 * H])
        g = jnp.tanh(gates[:, 2 * H:3 * H])
        o = jax.nn.sigmoid(gates[:, 3 * H:4 * H])
        c = f * c + i * g
        h = o * jnp.tanh(c)
    return jnp.tanh(h @ wlin + blin)


if __name__ == "__main__":
    key = jax.random.PRNGKey(0)
    k_x, k_p = jax.random.split(key)

    B, C, L = 2, 4, 16                      # batch, chromatin tracks, sequence length
    x = jax.random.normal(k_x, (B, C, L), jnp.float32)   # PyTorch NCL layout
    params = make_params(k_p, C)

    out = bichrom_chrom_forward(x, params)
    out = jax.block_until_ready(out)

    ref = reference_forward(x, params)
    assert out.shape == (B, 1)
    np.testing.assert_allclose(np.asarray(out), np.asarray(ref), rtol=1e-5, atol=1e-5)

    print("KERNEL_OK")
</pallas_src>

<mosaic_0001>
module attributes {stable_mosaic.version = 11 : i64} {
  func.func @bichrom_chrom_kernel(%arg0: memref<128x4xf32, #tpu.memory_space<vmem>>, %arg1: memref<4x15xf32, #tpu.memory_space<vmem>>, %arg2: memref<1x15xf32, #tpu.memory_space<vmem>>, %arg3: memref<15x20xf32, #tpu.memory_space<vmem>>, %arg4: memref<5x20xf32, #tpu.memory_space<vmem>>, %arg5: memref<1x20xf32, #tpu.memory_space<vmem>>, %arg6: memref<5x1xf32, #tpu.memory_space<vmem>>, %arg7: memref<1x1xf32, #tpu.memory_space<vmem>>, %arg8: memref<8x1xf32, #tpu.memory_space<vmem>>, %arg9: memref<128x20xf32, #tpu.memory_space<vmem>>) attributes {dimension_semantics = [], scalar_prefetch = 0 : i64, scratch_operands = 1 : i64, tpu.core_type = #tpu.core_type<tc>} {
    %c0 = arith.constant 0 : index
    %c0_0 = arith.constant 0 : index
    %0 = vector.load %arg0[%c0, %c0_0] : memref<128x4xf32, #tpu.memory_space<vmem>>, vector<128x4xf32>
    %c0_1 = arith.constant 0 : index
    %c0_2 = arith.constant 0 : index
    %1 = vector.load %arg1[%c0_1, %c0_2] : memref<4x15xf32, #tpu.memory_space<vmem>>, vector<4x15xf32>
    %cst = arith.constant dense<0.000000e+00> : vector<128x15xf32>
    %2 = tpu.matmul %0, %1, %cst {dimension_numbers = #tpu.dot_dimension_numbers<[1], [0], [0], [1], [0, 0, 1, 1], [], []>} : vector<128x4xf32>, vector<4x15xf32>, vector<128x15xf32> -> vector<128x15xf32>
    %c0_3 = arith.constant 0 : index
    %c0_4 = arith.constant 0 : index
    %3 = vector.load %arg2[%c0_3, %c0_4] : memref<1x15xf32, #tpu.memory_space<vmem>>, vector<1x15xf32>
    %4 = vector.broadcast %3 : vector<1x15xf32> to vector<128x15xf32>
    %5 = arith.addf %2, %4 : vector<128x15xf32>
    %cst_5 = arith.constant 0.000000e+00 : f32
    %6 = vector.broadcast %cst_5 : f32 to vector<128x15xf32>
    %7 = arith.maximumf %5, %6 : vector<128x15xf32>
    %c0_6 = arith.constant 0 : index
    %c0_7 = arith.constant 0 : index
    %8 = vector.load %arg3[%c0_6, %c0_7] : memref<15x20xf32, #tpu.memory_space<vmem>>, vector<15x20xf32>
    %cst_8 = arith.constant dense<0.000000e+00> : vector<128x20xf32>
    %9 = tpu.matmul %7, %8, %cst_8 {dimension_numbers = #tpu.dot_dimension_numbers<[1], [0], [0], [1], [0, 0, 1, 1], [], []>} : vector<128x15xf32>, vector<15x20xf32>, vector<128x20xf32> -> vector<128x20xf32>
    %c0_9 = arith.constant 0 : index
    %c0_10 = arith.constant 0 : index
    %10 = vector.load %arg5[%c0_9, %c0_10] : memref<1x20xf32, #tpu.memory_space<vmem>>, vector<1x20xf32>
    %11 = vector.broadcast %10 : vector<1x20xf32> to vector<128x20xf32>
    %12 = arith.addf %9, %11 : vector<128x20xf32>
    %c0_11 = arith.constant 0 : index
    %c0_12 = arith.constant 0 : index
    %13 = vector.load %arg9[%c0_11, %c0_12] : memref<128x20xf32, #tpu.memory_space<vmem>>, vector<128x20xf32>
    tpu.vector_store %arg9[%c0_11, %c0_12], %12 {strides = array<i32>} : memref<128x20xf32, #tpu.memory_space<vmem>>, vector<128x20xf32>,
    %c0_13 = arith.constant 0 : index
    %c0_14 = arith.constant 0 : index
    %14 = vector.load %arg4[%c0_13, %c0_14] : memref<5x20xf32, #tpu.memory_space<vmem>>, vector<5x20xf32>
    %cst_15 = arith.constant 0.000000e+00 : f32
    %15 = vector.broadcast %cst_15 : f32 to vector<8x5xf32>
    %cst_16 = arith.constant 0.000000e+00 : f32
    %16 = vector.broadcast %cst_16 : f32 to vector<8x5xf32>
    %c0_17 = arith.constant 0 : index
    %c0_18 = arith.constant 0 : index
    %17 = vector.load %arg9[%c0_17, %c0_18] : memref<128x20xf32, #tpu.memory_space<vmem>>, vector<8x20xf32>
    %18 = vector.extract_strided_slice %15 {offsets = [0, 0], sizes = [8, 1], strides = [1, 1]} : vector<8x5xf32> to vector<8x1xf32>
    %19 = vector.extract_strided_slice %14 {offsets = [0, 0], sizes = [1, 20], strides = [1, 1]} : vector<5x20xf32> to vector<1x20xf32>
    %20 = vector.broadcast %18 : vector<8x1xf32> to vector<8x20xf32>
    %21 = vector.broadcast %19 : vector<1x20xf32> to vector<8x20xf32>
    %22 = arith.mulf %20, %21 : vector<8x20xf32>
    %23 = arith.addf %17, %22 : vector<8x20xf32>
    %24 = vector.extract_strided_slice %15 {offsets = [0, 1], sizes = [8, 1], strides = [1, 1]} : vector<8x5xf32> to vector<8x1xf32>
    %25 = vector.extract_strided_slice %14 {offsets = [1, 0], sizes = [1, 20], strides = [1, 1]} : vector<5x20xf32> to vector<1x20xf32>
    %26 = vector.broadcast %24 : vector<8x1xf32> to vector<8x20xf32>
    %27 = vector.broadcast %25 : vector<1x20xf32> to vector<8x20xf32>
    %28 = arith.mulf %26, %27 : vector<8x20xf32>
    %29 = arith.addf %23, %28 : vector<8x20xf32>
    %30 = vector.extract_strided_slice %15 {offsets = [0, 2], sizes = [8, 1], strides = [1, 1]} : vector<8x5xf32> to vector<8x1xf32>
    %31 = vector.extract_strided_slice %14 {offsets = [2, 0], sizes = [1, 20], strides = [1, 1]} : vector<5x20xf32> to vector<1x20xf32>
    %32 = vector.broadcast %30 : vector<8x1xf32> to vector<8x20xf32>
    %33 = vector.broadcast %31 : vector<1x20xf32> to vector<8x20xf32>
    %34 = arith.mulf %32, %33 : vector<8x20xf32>
    %35 = arith.addf %29, %34 : vector<8x20xf32>
    %36 = vector.extract_strided_slice %15 {offsets = [0, 3], sizes = [8, 1], strides = [1, 1]} : vector<8x5xf32> to vector<8x1xf32>
    %37 = vector.extract_strided_slice %14 {offsets = [3, 0], sizes = [1, 20], strides = [1, 1]} : vector<5x20xf32> to vector<1x20xf32>
    %38 = vector.broadcast %36 : vector<8x1xf32> to vector<8x20xf32>
    %39 = vector.broadcast %37 : vector<1x20xf32> to vector<8x20xf32>
    %40 = arith.mulf %38, %39 : vector<8x20xf32>
    %41 = arith.addf %35, %40 : vector<8x20xf32>
    %42 = vector.extract_strided_slice %15 {offsets = [0, 4], sizes = [8, 1], strides = [1, 1]} : vector<8x5xf32> to vector<8x1xf32>
    %43 = vector.extract_strided_slice %14 {offsets = [4, 0], sizes = [1, 20], strides = [1, 1]} : vector<5x20xf32> to vector<1x20xf32>
    %44 = vector.broadcast %42 : vector<8x1xf32> to vector<8x20xf32>
    %45 = vector.broadcast %43 : vector<1x20xf32> to vector<8x20xf32>
    %46 = arith.mulf %44, %45 : vector<8x20xf32>
    %47 = arith.addf %41, %46 : vector<8x20xf32>
    %48 = arith.negf %47 : vector<8x20xf32>
    %49 = math.exp %48 : vector<8x20xf32>
    %cst_19 = arith.constant 1.000000e+00 : f32
    %50 = vector.broadcast %cst_19 : f32 to vector<8x20xf32>
    %51 = arith.addf %50, %49 : vector<8x20xf32>
    %52 = arith.divf %50, %51 : vector<8x20xf32>
    %53 = math.tanh %47 : vector<8x20xf32>
    %54 = vector.extract_strided_slice %52 {offsets = [0, 0], sizes = [8, 5], strides = [1, 1]} : vector<8x20xf32> to vector<8x5xf32>
    %55 = vector.extract_strided_slice %52 {offsets = [0, 5], sizes = [8, 5], strides = [1, 1]} : vector<8x20xf32> to vector<8x5xf32>
    %56 = vector.extract_strided_slice %53 {offsets = [0, 10], sizes = [8, 5], strides = [1, 1]} : vector<8x20xf32> to vector<8x5xf32>
    %57 = vector.extract_strided_slice %52 {offsets = [0, 15], sizes = [8, 5], strides = [1, 1]} : vector<8x20xf32> to vector<8x5xf32>
    %58 = arith.mulf %55, %16 : vector<8x5xf32>
    %59 = arith.mulf %54, %56 : vector<8x5xf32>
    %60 = arith.addf %58, %59 : vector<8x5xf32>
    %61 = math.tanh %60 : vector<8x5xf32>
    %62 = arith.mulf %57, %61 : vector<8x5xf32>
    %c8 = arith.constant 8 : index
    %c0_20 = arith.constant 0 : index
    %63 = vector.load %arg9[%c8, %c0_20] : memref<128x20xf32, #tpu.memory_space<vmem>>, vector<8x20xf32>
    %64 = vector.extract_strided_slice %62 {offsets = [0, 0], sizes = [8, 1], strides = [1, 1]} : vector<8x5xf32> to vector<8x1xf32>
    %65 = vector.extract_strided_slice %14 {offsets = [0, 0], sizes = [1, 20], strides = [1, 1]} : vector<5x20xf32> to vector<1x20xf32>
    %66 = vector.broadcast %64 : vector<8x1xf32> to vector<8x20xf32>
    %67 = vector.broadcast %65 : vector<1x20xf32> to vector<8x20xf32>
    %68 = arith.mulf %66, %67 : vector<8x20xf32>
    %69 = arith.addf %63, %68 : vector<8x20xf32>
    %70 = vector.extract_strided_slice %62 {offsets = [0, 1], sizes = [8, 1], strides = [1, 1]} : vector<8x5xf32> to vector<8x1xf32>
    %71 = vector.extract_strided_slice %14 {offsets = [1, 0], sizes = [1, 20], strides = [1, 1]} : vector<5x20xf32> to vector<1x20xf32>
    %72 = vector.broadcast %70 : vector<8x1xf32> to vector<8x20xf32>
    %73 = vector.broadcast %71 : vector<1x20xf32> to vector<8x20xf32>
    %74 = arith.mulf %72, %73 : vector<8x20xf32>
    %75 = arith.addf %69, %74 : vector<8x20xf32>
    %76 = vector.extract_strided_slice %62 {offsets = [0, 2], sizes = [8, 1], strides = [1, 1]} : vector<8x5xf32> to vector<8x1xf32>
    %77 = vector.extract_strided_slice %14 {offsets = [2, 0], sizes = [1, 20], strides = [1, 1]} : vector<5x20xf32> to vector<1x20xf32>
    %78 = vector.broadcast %76 : vector<8x1xf32> to vector<8x20xf32>
    %79 = vector.broadcast %77 : vector<1x20xf32> to vector<8x20xf32>
    %80 = arith.mulf %78, %79 : vector<8x20xf32>
    %81 = arith.addf %75, %80 : vector<8x20xf32>
    %82 = vector.extract_strided_slice %62 {offsets = [0, 3], sizes = [8, 1], strides = [1, 1]} : vector<8x5xf32> to vector<8x1xf32>
    %83 = vector.extract_strided_slice %14 {offsets = [3, 0], sizes = [1, 20], strides = [1, 1]} : vector<5x20xf32> to vector<1x20xf32>
    %84 = vector.broadcast %82 : vector<8x1xf32> to vector<8x20xf32>
    %85 = vector.broadcast %83 : vector<1x20xf32> to vector<8x20xf32>
    %86 = arith.mulf %84, %85 : vector<8x20xf32>
    %87 = arith.addf %81, %86 : vector<8x20xf32>
    %88 = vector.extract_strided_slice %62 {offsets = [0, 4], sizes = [8, 1], strides = [1, 1]} : vector<8x5xf32> to vector<8x1xf32>
    %89 = vector.extract_strided_slice %14 {offsets = [4, 0], sizes = [1, 20], strides = [1, 1]} : vector<5x20xf32> to vector<1x20xf32>
    %90 = vector.broadcast %88 : vector<8x1xf32> to vector<8x20xf32>
    %91 = vector.broadcast %89 : vector<1x20xf32> to vector<8x20xf32>
    %92 = arith.mulf %90, %91 : vector<8x20xf32>
    %93 = arith.addf %87, %92 : vector<8x20xf32>
    %94 = arith.negf %93 : vector<8x20xf32>
    %95 = math.exp %94 : vector<8x20xf32>
    %cst_21 = arith.constant 1.000000e+00 : f32
    %96 = vector.broadcast %cst_21 : f32 to vector<8x20xf32>
    %97 = arith.addf %96, %95 : vector<8x20xf32>
    %98 = arith.divf %96, %97 : vector<8x20xf32>
    %99 = math.tanh %93 : vector<8x20xf32>
    %100 = vector.extract_strided_slice %98 {offsets = [0, 0], sizes = [8, 5], strides = [1, 1]} : vector<8x20xf32> to vector<8x5xf32>
    %101 = vector.extract_strided_slice %98 {offsets = [0, 5], sizes = [8, 5], strides = [1, 1]} : vector<8x20xf32> to vector<8x5xf32>
    %102 = vector.extract_strided_slice %99 {offsets = [0, 10], sizes = [8, 5], strides = [1, 1]} : vector<8x20xf32> to vector<8x5xf32>
    %103 = vector.extract_strided_slice %98 {offsets = [0, 15], sizes = [8, 5], strides = [1, 1]} : vector<8x20xf32> to vector<8x5xf32>
    %104 = arith.mulf %101, %60 : vector<8x5xf32>
    %105 = arith.mulf %100, %102 : vector<8x5xf32>
    %106 = arith.addf %104, %105 : vector<8x5xf32>
    %107 = math.tanh %106 : vector<8x5xf32>
    %108 = arith.mulf %103, %107 : vector<8x5xf32>
    %c16 = arith.constant 16 : index
    %c0_22 = arith.constant 0 : index
    %109 = vector.load %arg9[%c16, %c0_22] : memref<128x20xf32, #tpu.memory_space<vmem>>, vector<8x20xf32>
    %110 = vector.extract_strided_slice %108 {offsets = [0, 0], sizes = [8, 1], strides = [1, 1]} : vector<8x5xf32> to vector<8x1xf32>
    %111 = vector.extract_strided_slice %14 {offsets = [0, 0], sizes = [1, 20], strides = [1, 1]} : vector<5x20xf32> to vector<1x20xf32>
    %112 = vector.broadcast %110 : vector<8x1xf32> to vector<8x20xf32>
    %113 = vector.broadcast %111 : vector<1x20xf32> to vector<8x20xf32>
    %114 = arith.mulf %112, %113 : vector<8x20xf32>
    %115 = arith.addf %109, %114 : vector<8x20xf32>
    %116 = vector.extract_strided_slice %108 {offsets = [0, 1], sizes = [8, 1], strides = [1, 1]} : vector<8x5xf32> to vector<8x1xf32>
    %117 = vector.extract_strided_slice %14 {offsets = [1, 0], sizes = [1, 20], strides = [1, 1]} : vector<5x20xf32> to vector<1x20xf32>
    %118 = vector.broadcast %116 : vector<8x1xf32> to vector<8x20xf32>
    %119 = vector.broadcast %117 : vector<1x20xf32> to vector<8x20xf32>
    %120 = arith.mulf %118, %119 : vector<8x20xf32>
    %121 = arith.addf %115, %120 : vector<8x20xf32>
    %122 = vector.extract_strided_slice %108 {offsets = [0, 2], sizes = [8, 1], strides = [1, 1]} : vector<8x5xf32> to vector<8x1xf32>
    %123 = vector.extract_strided_slice %14 {offsets = [2, 0], sizes = [1, 20], strides = [1, 1]} : vector<5x20xf32> to vector<1x20xf32>
    %124 = vector.broadcast %122 : vector<8x1xf32> to vector<8x20xf32>
    %125 = vector.broadcast %123 : vector<1x20xf32> to vector<8x20xf32>
    %126 = arith.mulf %124, %125 : vector<8x20xf32>
    %127 = arith.addf %121, %126 : vector<8x20xf32>
    %128 = vector.extract_strided_slice %108 {offsets = [0, 3], sizes = [8, 1], strides = [1, 1]} : vector<8x5xf32> to vector<8x1xf32>
    %129 = vector.extract_strided_slice %14 {offsets = [3, 0], sizes = [1, 20], strides = [1, 1]} : vector<5x20xf32> to vector<1x20xf32>
    %130 = vector.broadcast %128 : vector<8x1xf32> to vector<8x20xf32>
    %131 = vector.broadcast %129 : vector<1x20xf32> to vector<8x20xf32>
    %132 = arith.mulf %130, %131 : vector<8x20xf32>
    %133 = arith.addf %127, %132 : vector<8x20xf32>
    %134 = vector.extract_strided_slice %108 {offsets = [0, 4], sizes = [8, 1], strides = [1, 1]} : vector<8x5xf32> to vector<8x1xf32>
    %135 = vector.extract_strided_slice %14 {offsets = [4, 0], sizes = [1, 20], strides = [1, 1]} : vector<5x20xf32> to vector<1x20xf32>
    %136 = vector.broadcast %134 : vector<8x1xf32> to vector<8x20xf32>
    %137 = vector.broadcast %135 : vector<1x20xf32> to vector<8x20xf32>
    %138 = arith.mulf %136, %137 : vector<8x20xf32>
    %139 = arith.addf %133, %138 : vector<8x20xf32>
    %140 = arith.negf %139 : vector<8x20xf32>
    %141 = math.exp %140 : vector<8x20xf32>
    %cst_23 = arith.constant 1.000000e+00 : f32
    %142 = vector.broadcast %cst_23 : f32 to vector<8x20xf32>
    %143 = arith.addf %142, %141 : vector<8x20xf32>
    %144 = arith.divf %142, %143 : vector<8x20xf32>
    %145 = math.tanh %139 : vector<8x20xf32>
    %146 = vector.extract_strided_slice %144 {offsets = [0, 0], sizes = [8, 5], strides = [1, 1]} : vector<8x20xf32> to vector<8x5xf32>
    %147 = vector.extract_strided_slice %144 {offsets = [0, 5], sizes = [8, 5], strides = [1, 1]} : vector<8x20xf32> to vector<8x5xf32>
    %148 = vector.extract_strided_slice %145 {offsets = [0, 10], sizes = [8, 5], strides = [1, 1]} : vector<8x20xf32> to vector<8x5xf32>
    %149 = vector.extract_strided_slice %144 {offsets = [0, 15], sizes = [8, 5], strides = [1, 1]} : vector<8x20xf32> to vector<8x5xf32>
    %150 = arith.mulf %147, %106 : vector<8x5xf32>
    %151 = arith.mulf %146, %148 : vector<8x5xf32>
    %152 = arith.addf %150, %151 : vector<8x5xf32>
    %153 = math.tanh %152 : vector<8x5xf32>
    %154 = arith.mulf %149, %153 : vector<8x5xf32>
    %c24 = arith.constant 24 : index
    %c0_24 = arith.constant 0 : index
    %155 = vector.load %arg9[%c24, %c0_24] : memref<128x20xf32, #tpu.memory_space<vmem>>, vector<8x20xf32>
    %156 = vector.extract_strided_slice %154 {offsets = [0, 0], sizes = [8, 1], strides = [1, 1]} : vector<8x5xf32> to vector<8x1xf32>
    %157 = vector.extract_strided_slice %14 {offsets = [0, 0], sizes = [1, 20], strides = [1, 1]} : vector<5x20xf32> to vector<1x20xf32>
    %158 = vector.broadcast %156 : vector<8x1xf32> to vector<8x20xf32>
    %159 = vector.broadcast %157 : vector<1x20xf32> to vector<8x20xf32>
    %160 = arith.mulf %158, %159 : vector<8x20xf32>
    %161 = arith.addf %155, %160 : vector<8x20xf32>
    %162 = vector.extract_strided_slice %154 {offsets = [0, 1], sizes = [8, 1], strides = [1, 1]} : vector<8x5xf32> to vector<8x1xf32>
    %163 = vector.extract_strided_slice %14 {offsets = [1, 0], sizes = [1, 20], strides = [1, 1]} : vector<5x20xf32> to vector<1x20xf32>
    %164 = vector.broadcast %162 : vector<8x1xf32> to vector<8x20xf32>
    %165 = vector.broadcast %163 : vector<1x20xf32> to vector<8x20xf32>
    %166 = arith.mulf %164, %165 : vector<8x20xf32>
    %167 = arith.addf %161, %166 : vector<8x20xf32>
    %168 = vector.extract_strided_slice %154 {offsets = [0, 2], sizes = [8, 1], strides = [1, 1]} : vector<8x5xf32> to vector<8x1xf32>
    %169 = vector.extract_strided_slice %14 {offsets = [2, 0], sizes = [1, 20], strides = [1, 1]} : vector<5x20xf32> to vector<1x20xf32>
    %170 = vector.broadcast %168 : vector<8x1xf32> to vector<8x20xf32>
    %171 = vector.broadcast %169 : vector<1x20xf32> to vector<8x20xf32>
    %172 = arith.mulf %170, %171 : vector<8x20xf32>
    %173 = arith.addf %167, %172 : vector<8x20xf32>
    %174 = vector.extract_strided_slice %154 {offsets = [0, 3], sizes = [8, 1], strides = [1, 1]} : vector<8x5xf32> to vector<8x1xf32>
    %175 = vector.extract_strided_slice %14 {offsets = [3, 0], sizes = [1, 20], strides = [1, 1]} : vector<5x20xf32> to vector<1x20xf32>
    %176 = vector.broadcast %174 : vector<8x1xf32> to vector<8x20xf32>
    %177 = vector.broadcast %175 : vector<1x20xf32> to vector<8x20xf32>
    %178 = arith.mulf %176, %177 : vector<8x20xf32>
    %179 = arith.addf %173, %178 : vector<8x20xf32>
    %180 = vector.extract_strided_slice %154 {offsets = [0, 4], sizes = [8, 1], strides = [1, 1]} : vector<8x5xf32> to vector<8x1xf32>
    %181 = vector.extract_strided_slice %14 {offsets = [4, 0], sizes = [1, 20], strides = [1, 1]} : vector<5x20xf32> to vector<1x20xf32>
    %182 = vector.broadcast %180 : vector<8x1xf32> to vector<8x20xf32>
    %183 = vector.broadcast %181 : vector<1x20xf32> to vector<8x20xf32>
    %184 = arith.mulf %182, %183 : vector<8x20xf32>
    %185 = arith.addf %179, %184 : vector<8x20xf32>
    %186 = arith.negf %185 : vector<8x20xf32>
    %187 = math.exp %186 : vector<8x20xf32>
    %cst_25 = arith.constant 1.000000e+00 : f32
    %188 = vector.broadcast %cst_25 : f32 to vector<8x20xf32>
    %189 = arith.addf %188, %187 : vector<8x20xf32>
    %190 = arith.divf %188, %189 : vector<8x20xf32>
    %191 = math.tanh %185 : vector<8x20xf32>
    %192 = vector.extract_strided_slice %190 {offsets = [0, 0], sizes = [8, 5], strides = [1, 1]} : vector<8x20xf32> to vector<8x5xf32>
    %193 = vector.extract_strided_slice %190 {offsets = [0, 5], sizes = [8, 5], strides = [1, 1]} : vector<8x20xf32> to vector<8x5xf32>
    %194 = vector.extract_strided_slice %191 {offsets = [0, 10], sizes = [8, 5], strides = [1, 1]} : vector<8x20xf32> to vector<8x5xf32>
    %195 = vector.extract_strided_slice %190 {offsets = [0, 15], sizes = [8, 5], strides = [1, 1]} : vector<8x20xf32> to vector<8x5xf32>
    %196 = arith.mulf %193, %152 : vector<8x5xf32>
    %197 = arith.mulf %192, %194 : vector<8x5xf32>
    %198 = arith.addf %196, %197 : vector<8x5xf32>
    %199 = math.tanh %198 : vector<8x5xf32>
    %200 = arith.mulf %195, %199 : vector<8x5xf32>
    %c32 = arith.constant 32 : index
    %c0_26 = arith.constant 0 : index
    %201 = vector.load %arg9[%c32, %c0_26] : memref<128x20xf32, #tpu.memory_space<vmem>>, vector<8x20xf32>
    %202 = vector.extract_strided_slice %200 {offsets = [0, 0], sizes = [8, 1], strides = [1, 1]} : vector<8x5xf32> to vector<8x1xf32>
    %203 = vector.extract_strided_slice %14 {offsets = [0, 0], sizes = [1, 20], strides = [1, 1]} : vector<5x20xf32> to vector<1x20xf32>
    %204 = vector.broadcast %202 : vector<8x1xf32> to vector<8x20xf32>
    %205 = vector.broadcast %203 : vector<1x20xf32> to vector<8x20xf32>
    %206 = arith.mulf %204, %205 : vector<8x20xf32>
    %207 = arith.addf %201, %206 : vector<8x20xf32>
    %208 = vector.extract_strided_slice %200 {offsets = [0, 1], sizes = [8, 1], strides = [1, 1]} : vector<8x5xf32> to vector<8x1xf32>
    %209 = vector.extract_strided_slice %14 {offsets = [1, 0], sizes = [1, 20], strides = [1, 1]} : vector<5x20xf32> to vector<1x20xf32>
    %210 = vector.broadcast %208 : vector<8x1xf32> to vector<8x20xf32>
    %211 = vector.broadcast %209 : vector<1x20xf32> to vector<8x20xf32>
    %212 = arith.mulf %210, %211 : vector<8x20xf32>
    %213 = arith.addf %207, %212 : vector<8x20xf32>
    %214 = vector.extract_strided_slice %200 {offsets = [0, 2], sizes = [8, 1], strides = [1, 1]} : vector<8x5xf32> to vector<8x1xf32>
    %215 = vector.extract_strided_slice %14 {offsets = [2, 0], sizes = [1, 20], strides = [1, 1]} : vector<5x20xf32> to vector<1x20xf32>
    %216 = vector.broadcast %214 : vector<8x1xf32> to vector<8x20xf32>
    %217 = vector.broadcast %215 : vector<1x20xf32> to vector<8x20xf32>
    %218 = arith.mulf %216, %217 : vector<8x20xf32>
    %219 = arith.addf %213, %218 : vector<8x20xf32>
    %220 = vector.extract_strided_slice %200 {offsets = [0, 3], sizes = [8, 1], strides = [1, 1]} : vector<8x5xf32> to vector<8x1xf32>
    %221 = vector.extract_strided_slice %14 {offsets = [3, 0], sizes = [1, 20], strides = [1, 1]} : vector<5x20xf32> to vector<1x20xf32>
    %222 = vector.broadcast %220 : vector<8x1xf32> to vector<8x20xf32>
    %223 = vector.broadcast %221 : vector<1x20xf32> to vector<8x20xf32>
    %224 = arith.mulf %222, %223 : vector<8x20xf32>
    %225 = arith.addf %219, %224 : vector<8x20xf32>
    %226 = vector.extract_strided_slice %200 {offsets = [0, 4], sizes = [8, 1], strides = [1, 1]} : vector<8x5xf32> to vector<8x1xf32>
    %227 = vector.extract_strided_slice %14 {offsets = [4, 0], sizes = [1, 20], strides = [1, 1]} : vector<5x20xf32> to vector<1x20xf32>
    %228 = vector.broadcast %226 : vector<8x1xf32> to vector<8x20xf32>
    %229 = vector.broadcast %227 : vector<1x20xf32> to vector<8x20xf32>
    %230 = arith.mulf %228, %229 : vector<8x20xf32>
    %231 = arith.addf %225, %230 : vector<8x20xf32>
    %232 = arith.negf %231 : vector<8x20xf32>
    %233 = math.exp %232 : vector<8x20xf32>
    %cst_27 = arith.constant 1.000000e+00 : f32
    %234 = vector.broadcast %cst_27 : f32 to vector<8x20xf32>
    %235 = arith.addf %234, %233 : vector<8x20xf32>
    %236 = arith.divf %234, %235 : vector<8x20xf32>
    %237 = math.tanh %231 : vector<8x20xf32>
    %238 = vector.extract_strided_slice %236 {offsets = [0, 0], sizes = [8, 5], strides = [1, 1]} : vector<8x20xf32> to vector<8x5xf32>
    %239 = vector.extract_strided_slice %236 {offsets = [0, 5], sizes = [8, 5], strides = [1, 1]} : vector<8x20xf32> to vector<8x5xf32>
    %240 = vector.extract_strided_slice %237 {offsets = [0, 10], sizes = [8, 5], strides = [1, 1]} : vector<8x20xf32> to vector<8x5xf32>
    %241 = vector.extract_strided_slice %236 {offsets = [0, 15], sizes = [8, 5], strides = [1, 1]} : vector<8x20xf32> to vector<8x5xf32>
    %242 = arith.mulf %239, %198 : vector<8x5xf32>
    %243 = arith.mulf %238, %240 : vector<8x5xf32>
    %244 = arith.addf %242, %243 : vector<8x5xf32>
    %245 = math.tanh %244 : vector<8x5xf32>
    %246 = arith.mulf %241, %245 : vector<8x5xf32>
    %c40 = arith.constant 40 : index
    %c0_28 = arith.constant 0 : index
    %247 = vector.load %arg9[%c40, %c0_28] : memref<128x20xf32, #tpu.memory_space<vmem>>, vector<8x20xf32>
    %248 = vector.extract_strided_slice %246 {offsets = [0, 0], sizes = [8, 1], strides = [1, 1]} : vector<8x5xf32> to vector<8x1xf32>
    %249 = vector.extract_strided_slice %14 {offsets = [0, 0], sizes = [1, 20], strides = [1, 1]} : vector<5x20xf32> to vector<1x20xf32>
    %250 = vector.broadcast %248 : vector<8x1xf32> to vector<8x20xf32>
    %251 = vector.broadcast %249 : vector<1x20xf32> to vector<8x20xf32>
    %252 = arith.mulf %250, %251 : vector<8x20xf32>
    %253 = arith.addf %247, %252 : vector<8x20xf32>
    %254 = vector.extract_strided_slice %246 {offsets = [0, 1], sizes = [8, 1], strides = [1, 1]} : vector<8x5xf32> to vector<8x1xf32>
    %255 = vector.extract_strided_slice %14 {offsets = [1, 0], sizes = [1, 20], strides = [1, 1]} : vector<5x20xf32> to vector<1x20xf32>
    %256 = vector.broadcast %254 : vector<8x1xf32> to vector<8x20xf32>
    %257 = vector.broadcast %255 : vector<1x20xf32> to vector<8x20xf32>
    %258 = arith.mulf %256, %257 : vector<8x20xf32>
    %259 = arith.addf %253, %258 : vector<8x20xf32>
    %260 = vector.extract_strided_slice %246 {offsets = [0, 2], sizes = [8, 1], strides = [1, 1]} : vector<8x5xf32> to vector<8x1xf32>
    %261 = vector.extract_strided_slice %14 {offsets = [2, 0], sizes = [1, 20], strides = [1, 1]} : vector<5x20xf32> to vector<1x20xf32>
    %262 = vector.broadcast %260 : vector<8x1xf32> to vector<8x20xf32>
    %263 = vector.broadcast %261 : vector<1x20xf32> to vector<8x20xf32>
    %264 = arith.mulf %262, %263 : vector<8x20xf32>
    %265 = arith.addf %259, %264 : vector<8x20xf32>
    %266 = vector.extract_strided_slice %246 {offsets = [0, 3], sizes = [8, 1], strides = [1, 1]} : vector<8x5xf32> to vector<8x1xf32>
    %267 = vector.extract_strided_slice %14 {offsets = [3, 0], sizes = [1, 20], strides = [1, 1]} : vector<5x20xf32> to vector<1x20xf32>
    %268 = vector.broadcast %266 : vector<8x1xf32> to vector<8x20xf32>
    %269 = vector.broadcast %267 : vector<1x20xf32> to vector<8x20xf32>
    %270 = arith.mulf %268, %269 : vector<8x20xf32>
    %271 = arith.addf %265, %270 : vector<8x20xf32>
    %272 = vector.extract_strided_slice %246 {offsets = [0, 4], sizes = [8, 1], strides = [1, 1]} : vector<8x5xf32> to vector<8x1xf32>
    %273 = vector.extract_strided_slice %14 {offsets = [4, 0], sizes = [1, 20], strides = [1, 1]} : vector<5x20xf32> to vector<1x20xf32>
    %274 = vector.broadcast %272 : vector<8x1xf32> to vector<8x20xf32>
    %275 = vector.broadcast %273 : vector<1x20xf32> to vector<8x20xf32>
    %276 = arith.mulf %274, %275 : vector<8x20xf32>
    %277 = arith.addf %271, %276 : vector<8x20xf32>
    %278 = arith.negf %277 : vector<8x20xf32>
    %279 = math.exp %278 : vector<8x20xf32>
    %cst_29 = arith.constant 1.000000e+00 : f32
    %280 = vector.broadcast %cst_29 : f32 to vector<8x20xf32>
    %281 = arith.addf %280, %279 : vector<8x20xf32>
    %282 = arith.divf %280, %281 : vector<8x20xf32>
    %283 = math.tanh %277 : vector<8x20xf32>
    %284 = vector.extract_strided_slice %282 {offsets = [0, 0], sizes = [8, 5], strides = [1, 1]} : vector<8x20xf32> to vector<8x5xf32>
    %285 = vector.extract_strided_slice %282 {offsets = [0, 5], sizes = [8, 5], strides = [1, 1]} : vector<8x20xf32> to vector<8x5xf32>
    %286 = vector.extract_strided_slice %283 {offsets = [0, 10], sizes = [8, 5], strides = [1, 1]} : vector<8x20xf32> to vector<8x5xf32>
    %287 = vector.extract_strided_slice %282 {offsets = [0, 15], sizes = [8, 5], strides = [1, 1]} : vector<8x20xf32> to vector<8x5xf32>
    %288 = arith.mulf %285, %244 : vector<8x5xf32>
    %289 = arith.mulf %284, %286 : vector<8x5xf32>
    %290 = arith.addf %288, %289 : vector<8x5xf32>
    %291 = math.tanh %290 : vector<8x5xf32>
    %292 = arith.mulf %287, %291 : vector<8x5xf32>
    %c48 = arith.constant 48 : index
    %c0_30 = arith.constant 0 : index
    %293 = vector.load %arg9[%c48, %c0_30] : memref<128x20xf32, #tpu.memory_space<vmem>>, vector<8x20xf32>
    %294 = vector.extract_strided_slice %292 {offsets = [0, 0], sizes = [8, 1], strides = [1, 1]} : vector<8x5xf32> to vector<8x1xf32>
    %295 = vector.extract_strided_slice %14 {offsets = [0, 0], sizes = [1, 20], strides = [1, 1]} : vector<5x20xf32> to vector<1x20xf32>
    %296 = vector.broadcast %294 : vector<8x1xf32> to vector<8x20xf32>
    %297 = vector.broadcast %295 : vector<1x20xf32> to vector<8x20xf32>
    %298 = arith.mulf %296, %297 : vector<8x20xf32>
    %299 = arith.addf %293, %298 : vector<8x20xf32>
    %300 = vector.extract_strided_slice %292 {offsets = [0, 1], sizes = [8, 1], strides = [1, 1]} : vector<8x5xf32> to vector<8x1xf32>
    %301 = vector.extract_strided_slice %14 {offsets = [1, 0], sizes = [1, 20], strides = [1, 1]} : vector<5x20xf32> to vector<1x20xf32>
    %302 = vector.broadcast %300 : vector<8x1xf32> to vector<8x20xf32>
    %303 = vector.broadcast %301 : vector<1x20xf32> to vector<8x20xf32>
    %304 = arith.mulf %302, %303 : vector<8x20xf32>
    %305 = arith.addf %299, %304 : vector<8x20xf32>
    %306 = vector.extract_strided_slice %292 {offsets = [0, 2], sizes = [8, 1], strides = [1, 1]} : vector<8x5xf32> to vector<8x1xf32>
    %307 = vector.extract_strided_slice %14 {offsets = [2, 0], sizes = [1, 20], strides = [1, 1]} : vector<5x20xf32> to vector<1x20xf32>
    %308 = vector.broadcast %306 : vector<8x1xf32> to vector<8x20xf32>
    %309 = vector.broadcast %307 : vector<1x20xf32> to vector<8x20xf32>
    %310 = arith.mulf %308, %309 : vector<8x20xf32>
    %311 = arith.addf %305, %310 : vector<8x20xf32>
    %312 = vector.extract_strided_slice %292 {offsets = [0, 3], sizes = [8, 1], strides = [1, 1]} : vector<8x5xf32> to vector<8x1xf32>
    %313 = vector.extract_strided_slice %14 {offsets = [3, 0], sizes = [1, 20], strides = [1, 1]} : vector<5x20xf32> to vector<1x20xf32>
    %314 = vector.broadcast %312 : vector<8x1xf32> to vector<8x20xf32>
    %315 = vector.broadcast %313 : vector<1x20xf32> to vector<8x20xf32>
    %316 = arith.mulf %314, %315 : vector<8x20xf32>
    %317 = arith.addf %311, %316 : vector<8x20xf32>
    %318 = vector.extract_strided_slice %292 {offsets = [0, 4], sizes = [8, 1], strides = [1, 1]} : vector<8x5xf32> to vector<8x1xf32>
    %319 = vector.extract_strided_slice %14 {offsets = [4, 0], sizes = [1, 20], strides = [1, 1]} : vector<5x20xf32> to vector<1x20xf32>
    %320 = vector.broadcast %318 : vector<8x1xf32> to vector<8x20xf32>
    %321 = vector.broadcast %319 : vector<1x20xf32> to vector<8x20xf32>
    %322 = arith.mulf %320, %321 : vector<8x20xf32>
    %323 = arith.addf %317, %322 : vector<8x20xf32>
    %324 = arith.negf %323 : vector<8x20xf32>
    %325 = math.exp %324 : vector<8x20xf32>
    %cst_31 = arith.constant 1.000000e+00 : f32
    %326 = vector.broadcast %cst_31 : f32 to vector<8x20xf32>
    %327 = arith.addf %326, %325 : vector<8x20xf32>
    %328 = arith.divf %326, %327 : vector<8x20xf32>
    %329 = math.tanh %323 : vector<8x20xf32>
    %330 = vector.extract_strided_slice %328 {offsets = [0, 0], sizes = [8, 5], strides = [1, 1]} : vector<8x20xf32> to vector<8x5xf32>
    %331 = vector.extract_strided_slice %328 {offsets = [0, 5], sizes = [8, 5], strides = [1, 1]} : vector<8x20xf32> to vector<8x5xf32>
    %332 = vector.extract_strided_slice %329 {offsets = [0, 10], sizes = [8, 5], strides = [1, 1]} : vector<8x20xf32> to vector<8x5xf32>
    %333 = vector.extract_strided_slice %328 {offsets = [0, 15], sizes = [8, 5], strides = [1, 1]} : vector<8x20xf32> to vector<8x5xf32>
    %334 = arith.mulf %331, %290 : vector<8x5xf32>
    %335 = arith.mulf %330, %332 : vector<8x5xf32>
    %336 = arith.addf %334, %335 : vector<8x5xf32>
    %337 = math.tanh %336 : vector<8x5xf32>
    %338 = arith.mulf %333, %337 : vector<8x5xf32>
    %c56 = arith.constant 56 : index
    %c0_32 = arith.constant 0 : index
    %339 = vector.load %arg9[%c56, %c0_32] : memref<128x20xf32, #tpu.memory_space<vmem>>, vector<8x20xf32>
    %340 = vector.extract_strided_slice %338 {offsets = [0, 0], sizes = [8, 1], strides = [1, 1]} : vector<8x5xf32> to vector<8x1xf32>
    %341 = vector.extract_strided_slice %14 {offsets = [0, 0], sizes = [1, 20], strides = [1, 1]} : vector<5x20xf32> to vector<1x20xf32>
    %342 = vector.broadcast %340 : vector<8x1xf32> to vector<8x20xf32>
    %343 = vector.broadcast %341 : vector<1x20xf32> to vector<8x20xf32>
    %344 = arith.mulf %342, %343 : vector<8x20xf32>
    %345 = arith.addf %339, %344 : vector<8x20xf32>
    %346 = vector.extract_strided_slice %338 {offsets = [0, 1], sizes = [8, 1], strides = [1, 1]} : vector<8x5xf32> to vector<8x1xf32>
    %347 = vector.extract_strided_slice %14 {offsets = [1, 0], sizes = [1, 20], strides = [1, 1]} : vector<5x20xf32> to vector<1x20xf32>
    %348 = vector.broadcast %346 : vector<8x1xf32> to vector<8x20xf32>
    %349 = vector.broadcast %347 : vector<1x20xf32> to vector<8x20xf32>
    %350 = arith.mulf %348, %349 : vector<8x20xf32>
    %351 = arith.addf %345, %350 : vector<8x20xf32>
    %352 = vector.extract_strided_slice %338 {offsets = [0, 2], sizes = [8, 1], strides = [1, 1]} : vector<8x5xf32> to vector<8x1xf32>
    %353 = vector.extract_strided_slice %14 {offsets = [2, 0], sizes = [1, 20], strides = [1, 1]} : vector<5x20xf32> to vector<1x20xf32>
    %354 = vector.broadcast %352 : vector<8x1xf32> to vector<8x20xf32>
    %355 = vector.broadcast %353 : vector<1x20xf32> to vector<8x20xf32>
    %356 = arith.mulf %354, %355 : vector<8x20xf32>
    %357 = arith.addf %351, %356 : vector<8x20xf32>
    %358 = vector.extract_strided_slice %338 {offsets = [0, 3], sizes = [8, 1], strides = [1, 1]} : vector<8x5xf32> to vector<8x1xf32>
    %359 = vector.extract_strided_slice %14 {offsets = [3, 0], sizes = [1, 20], strides = [1, 1]} : vector<5x20xf32> to vector<1x20xf32>
    %360 = vector.broadcast %358 : vector<8x1xf32> to vector<8x20xf32>
    %361 = vector.broadcast %359 : vector<1x20xf32> to vector<8x20xf32>
    %362 = arith.mulf %360, %361 : vector<8x20xf32>
    %363 = arith.addf %357, %362 : vector<8x20xf32>
    %364 = vector.extract_strided_slice %338 {offsets = [0, 4], sizes = [8, 1], strides = [1, 1]} : vector<8x5xf32> to vector<8x1xf32>
    %365 = vector.extract_strided_slice %14 {offsets = [4, 0], sizes = [1, 20], strides = [1, 1]} : vector<5x20xf32> to vector<1x20xf32>
    %366 = vector.broadcast %364 : vector<8x1xf32> to vector<8x20xf32>
    %367 = vector.broadcast %365 : vector<1x20xf32> to vector<8x20xf32>
    %368 = arith.mulf %366, %367 : vector<8x20xf32>
    %369 = arith.addf %363, %368 : vector<8x20xf32>
    %370 = arith.negf %369 : vector<8x20xf32>
    %371 = math.exp %370 : vector<8x20xf32>
    %cst_33 = arith.constant 1.000000e+00 : f32
    %372 = vector.broadcast %cst_33 : f32 to vector<8x20xf32>
    %373 = arith.addf %372, %371 : vector<8x20xf32>
    %374 = arith.divf %372, %373 : vector<8x20xf32>
    %375 = math.tanh %369 : vector<8x20xf32>
    %376 = vector.extract_strided_slice %374 {offsets = [0, 0], sizes = [8, 5], strides = [1, 1]} : vector<8x20xf32> to vector<8x5xf32>
    %377 = vector.extract_strided_slice %374 {offsets = [0, 5], sizes = [8, 5], strides = [1, 1]} : vector<8x20xf32> to vector<8x5xf32>
    %378 = vector.extract_strided_slice %375 {offsets = [0, 10], sizes = [8, 5], strides = [1, 1]} : vector<8x20xf32> to vector<8x5xf32>
    %379 = vector.extract_strided_slice %374 {offsets = [0, 15], sizes = [8, 5], strides = [1, 1]} : vector<8x20xf32> to vector<8x5xf32>
    %380 = arith.mulf %377, %336 : vector<8x5xf32>
    %381 = arith.mulf %376, %378 : vector<8x5xf32>
    %382 = arith.addf %380, %381 : vector<8x5xf32>
    %383 = math.tanh %382 : vector<8x5xf32>
    %384 = arith.mulf %379, %383 : vector<8x5xf32>
    %c64 = arith.constant 64 : index
    %c0_34 = arith.constant 0 : index
    %385 = vector.load %arg9[%c64, %c0_34] : memref<128x20xf32, #tpu.memory_space<vmem>>, vector<8x20xf32>
    %386 = vector.extract_strided_slice %384 {offsets = [0, 0], sizes = [8, 1], strides = [1, 1]} : vector<8x5xf32> to vector<8x1xf32>
    %387 = vector.extract_strided_slice %14 {offsets = [0, 0], sizes = [1, 20], strides = [1, 1]} : vector<5x20xf32> to vector<1x20xf32>
    %388 = vector.broadcast %386 : vector<8x1xf32> to vector<8x20xf32>
    %389 = vector.broadcast %387 : vector<1x20xf32> to vector<8x20xf32>
    %390 = arith.mulf %388, %389 : vector<8x20xf32>
    %391 = arith.addf %385, %390 : vector<8x20xf32>
    %392 = vector.extract_strided_slice %384 {offsets = [0, 1], sizes = [8, 1], strides = [1, 1]} : vector<8x5xf32> to vector<8x1xf32>
    %393 = vector.extract_strided_slice %14 {offsets = [1, 0], sizes = [1, 20], strides = [1, 1]} : vector<5x20xf32> to vector<1x20xf32>
    %394 = vector.broadcast %392 : vector<8x1xf32> to vector<8x20xf32>
    %395 = vector.broadcast %393 : vector<1x20xf32> to vector<8x20xf32>
    %396 = arith.mulf %394, %395 : vector<8x20xf32>
    %397 = arith.addf %391, %396 : vector<8x20xf32>
    %398 = vector.extract_strided_slice %384 {offsets = [0, 2], sizes = [8, 1], strides = [1, 1]} : vector<8x5xf32> to vector<8x1xf32>
    %399 = vector.extract_strided_slice %14 {offsets = [2, 0], sizes = [1, 20], strides = [1, 1]} : vector<5x20xf32> to vector<1x20xf32>
    %400 = vector.broadcast %398 : vector<8x1xf32> to vector<8x20xf32>
    %401 = vector.broadcast %399 : vector<1x20xf32> to vector<8x20xf32>
    %402 = arith.mulf %400, %401 : vector<8x20xf32>
    %403 = arith.addf %397, %402 : vector<8x20xf32>
    %404 = vector.extract_strided_slice %384 {offsets = [0, 3], sizes = [8, 1], strides = [1, 1]} : vector<8x5xf32> to vector<8x1xf32>
    %405 = vector.extract_strided_slice %14 {offsets = [3, 0], sizes = [1, 20], strides = [1, 1]} : vector<5x20xf32> to vector<1x20xf32>
    %406 = vector.broadcast %404 : vector<8x1xf32> to vector<8x20xf32>
    %407 = vector.broadcast %405 : vector<1x20xf32> to vector<8x20xf32>
    %408 = arith.mulf %406, %407 : vector<8x20xf32>
    %409 = arith.addf %403, %408 : vector<8x20xf32>
    %410 = vector.extract_strided_slice %384 {offsets = [0, 4], sizes = [8, 1], strides = [1, 1]} : vector<8x5xf32> to vector<8x1xf32>
    %411 = vector.extract_strided_slice %14 {offsets = [4, 0], sizes = [1, 20], strides = [1, 1]} : vector<5x20xf32> to vector<1x20xf32>
    %412 = vector.broadcast %410 : vector<8x1xf32> to vector<8x20xf32>
    %413 = vector.broadcast %411 : vector<1x20xf32> to vector<8x20xf32>
    %414 = arith.mulf %412, %413 : vector<8x20xf32>
    %415 = arith.addf %409, %414 : vector<8x20xf32>
    %416 = arith.negf %415 : vector<8x20xf32>
    %417 = math.exp %416 : vector<8x20xf32>
    %cst_35 = arith.constant 1.000000e+00 : f32
    %418 = vector.broadcast %cst_35 : f32 to vector<8x20xf32>
    %419 = arith.addf %418, %417 : vector<8x20xf32>
    %420 = arith.divf %418, %419 : vector<8x20xf32>
    %421 = math.tanh %415 : vector<8x20xf32>
    %422 = vector.extract_strided_slice %420 {offsets = [0, 0], sizes = [8, 5], strides = [1, 1]} : vector<8x20xf32> to vector<8x5xf32>
    %423 = vector.extract_strided_slice %420 {offsets = [0, 5], sizes = [8, 5], strides = [1, 1]} : vector<8x20xf32> to vector<8x5xf32>
    %424 = vector.extract_strided_slice %421 {offsets = [0, 10], sizes = [8, 5], strides = [1, 1]} : vector<8x20xf32> to vector<8x5xf32>
    %425 = vector.extract_strided_slice %420 {offsets = [0, 15], sizes = [8, 5], strides = [1, 1]} : vector<8x20xf32> to vector<8x5xf32>
    %426 = arith.mulf %423, %382 : vector<8x5xf32>
    %427 = arith.mulf %422, %424 : vector<8x5xf32>
    %428 = arith.addf %426, %427 : vector<8x5xf32>
    %429 = math.tanh %428 : vector<8x5xf32>
    %430 = arith.mulf %425, %429 : vector<8x5xf32>
    %c72 = arith.constant 72 : index
    %c0_36 = arith.constant 0 : index
    %431 = vector.load %arg9[%c72, %c0_36] : memref<128x20xf32, #tpu.memory_space<vmem>>, vector<8x20xf32>
    %432 = vector.extract_strided_slice %430 {offsets = [0, 0], sizes = [8, 1], strides = [1, 1]} : vector<8x5xf32> to vector<8x1xf32>
    %433 = vector.extract_strided_slice %14 {offsets = [0, 0], sizes = [1, 20], strides = [1, 1]} : vector<5x20xf32> to vector<1x20xf32>
    %434 = vector.broadcast %432 : vector<8x1xf32> to vector<8x20xf32>
    %435 = vector.broadcast %433 : vector<1x20xf32> to vector<8x20xf32>
    %436 = arith.mulf %434, %435 : vector<8x20xf32>
    %437 = arith.addf %431, %436 : vector<8x20xf32>
    %438 = vector.extract_strided_slice %430 {offsets = [0, 1], sizes = [8, 1], strides = [1, 1]} : vector<8x5xf32> to vector<8x1xf32>
    %439 = vector.extract_strided_slice %14 {offsets = [1, 0], sizes = [1, 20], strides = [1, 1]} : vector<5x20xf32> to vector<1x20xf32>
    %440 = vector.broadcast %438 : vector<8x1xf32> to vector<8x20xf32>
    %441 = vector.broadcast %439 : vector<1x20xf32> to vector<8x20xf32>
    %442 = arith.mulf %440, %441 : vector<8x20xf32>
    %443 = arith.addf %437, %442 : vector<8x20xf32>
    %444 = vector.extract_strided_slice %430 {offsets = [0, 2], sizes = [8, 1], strides = [1, 1]} : vector<8x5xf32> to vector<8x1xf32>
    %445 = vector.extract_strided_slice %14 {offsets = [2, 0], sizes = [1, 20], strides = [1, 1]} : vector<5x20xf32> to vector<1x20xf32>
    %446 = vector.broadcast %444 : vector<8x1xf32> to vector<8x20xf32>
    %447 = vector.broadcast %445 : vector<1x20xf32> to vector<8x20xf32>
    %448 = arith.mulf %446, %447 : vector<8x20xf32>
    %449 = arith.addf %443, %448 : vector<8x20xf32>
    %450 = vector.extract_strided_slice %430 {offsets = [0, 3], sizes = [8, 1], strides = [1, 1]} : vector<8x5xf32> to vector<8x1xf32>
    %451 = vector.extract_strided_slice %14 {offsets = [3, 0], sizes = [1, 20], strides = [1, 1]} : vector<5x20xf32> to vector<1x20xf32>
    %452 = vector.broadcast %450 : vector<8x1xf32> to vector<8x20xf32>
    %453 = vector.broadcast %451 : vector<1x20xf32> to vector<8x20xf32>
    %454 = arith.mulf %452, %453 : vector<8x20xf32>
    %455 = arith.addf %449, %454 : vector<8x20xf32>
    %456 = vector.extract_strided_slice %430 {offsets = [0, 4], sizes = [8, 1], strides = [1, 1]} : vector<8x5xf32> to vector<8x1xf32>
    %457 = vector.extract_strided_slice %14 {offsets = [4, 0], sizes = [1, 20], strides = [1, 1]} : vector<5x20xf32> to vector<1x20xf32>
    %458 = vector.broadcast %456 : vector<8x1xf32> to vector<8x20xf32>
    %459 = vector.broadcast %457 : vector<1x20xf32> to vector<8x20xf32>
    %460 = arith.mulf %458, %459 : vector<8x20xf32>
    %461 = arith.addf %455, %460 : vector<8x20xf32>
    %462 = arith.negf %461 : vector<8x20xf32>
    %463 = math.exp %462 : vector<8x20xf32>
    %cst_37 = arith.constant 1.000000e+00 : f32
    %464 = vector.broadcast %cst_37 : f32 to vector<8x20xf32>
    %465 = arith.addf %464, %463 : vector<8x20xf32>
    %466 = arith.divf %464, %465 : vector<8x20xf32>
    %467 = math.tanh %461 : vector<8x20xf32>
    %468 = vector.extract_strided_slice %466 {offsets = [0, 0], sizes = [8, 5], strides = [1, 1]} : vector<8x20xf32> to vector<8x5xf32>
    %469 = vector.extract_strided_slice %466 {offsets = [0, 5], sizes = [8, 5], strides = [1, 1]} : vector<8x20xf32> to vector<8x5xf32>
    %470 = vector.extract_strided_slice %467 {offsets = [0, 10], sizes = [8, 5], strides = [1, 1]} : vector<8x20xf32> to vector<8x5xf32>
    %471 = vector.extract_strided_slice %466 {offsets = [0, 15], sizes = [8, 5], strides = [1, 1]} : vector<8x20xf32> to vector<8x5xf32>
    %472 = arith.mulf %469, %428 : vector<8x5xf32>
    %473 = arith.mulf %468, %470 : vector<8x5xf32>
    %474 = arith.addf %472, %473 : vector<8x5xf32>
    %475 = math.tanh %474 : vector<8x5xf32>
    %476 = arith.mulf %471, %475 : vector<8x5xf32>
    %c80 = arith.constant 80 : index
    %c0_38 = arith.constant 0 : index
    %477 = vector.load %arg9[%c80, %c0_38] : memref<128x20xf32, #tpu.memory_space<vmem>>, vector<8x20xf32>
    %478 = vector.extract_strided_slice %476 {offsets = [0, 0], sizes = [8, 1], strides = [1, 1]} : vector<8x5xf32> to vector<8x1xf32>
    %479 = vector.extract_strided_slice %14 {offsets = [0, 0], sizes = [1, 20], strides = [1, 1]} : vector<5x20xf32> to vector<1x20xf32>
    %480 = vector.broadcast %478 : vector<8x1xf32> to vector<8x20xf32>
    %481 = vector.broadcast %479 : vector<1x20xf32> to vector<8x20xf32>
    %482 = arith.mulf %480, %481 : vector<8x20xf32>
    %483 = arith.addf %477, %482 : vector<8x20xf32>
    %484 = vector.extract_strided_slice %476 {offsets = [0, 1], sizes = [8, 1], strides = [1, 1]} : vector<8x5xf32> to vector<8x1xf32>
    %485 = vector.extract_strided_slice %14 {offsets = [1, 0], sizes = [1, 20], strides = [1, 1]} : vector<5x20xf32> to vector<1x20xf32>
    %486 = vector.broadcast %484 : vector<8x1xf32> to vector<8x20xf32>
    %487 = vector.broadcast %485 : vector<1x20xf32> to vector<8x20xf32>
    %488 = arith.mulf %486, %487 : vector<8x20xf32>
    %489 = arith.addf %483, %488 : vector<8x20xf32>
    %490 = vector.extract_strided_slice %476 {offsets = [0, 2], sizes = [8, 1], strides = [1, 1]} : vector<8x5xf32> to vector<8x1xf32>
    %491 = vector.extract_strided_slice %14 {offsets = [2, 0], sizes = [1, 20], strides = [1, 1]} : vector<5x20xf32> to vector<1x20xf32>
    %492 = vector.broadcast %490 : vector<8x1xf32> to vector<8x20xf32>
    %493 = vector.broadcast %491 : vector<1x20xf32> to vector<8x20xf32>
    %494 = arith.mulf %492, %493 : vector<8x20xf32>
    %495 = arith.addf %489, %494 : vector<8x20xf32>
    %496 = vector.extract_strided_slice %476 {offsets = [0, 3], sizes = [8, 1], strides = [1, 1]} : vector<8x5xf32> to vector<8x1xf32>
    %497 = vector.extract_strided_slice %14 {offsets = [3, 0], sizes = [1, 20], strides = [1, 1]} : vector<5x20xf32> to vector<1x20xf32>
    %498 = vector.broadcast %496 : vector<8x1xf32> to vector<8x20xf32>
    %499 = vector.broadcast %497 : vector<1x20xf32> to vector<8x20xf32>
    %500 = arith.mulf %498, %499 : vector<8x20xf32>
    %501 = arith.addf %495, %500 : vector<8x20xf32>
    %502 = vector.extract_strided_slice %476 {offsets = [0, 4], sizes = [8, 1], strides = [1, 1]} : vector<8x5xf32> to vector<8x1xf32>
    %503 = vector.extract_strided_slice %14 {offsets = [4, 0], sizes = [1, 20], strides = [1, 1]} : vector<5x20xf32> to vector<1x20xf32>
    %504 = vector.broadcast %502 : vector<8x1xf32> to vector<8x20xf32>
    %505 = vector.broadcast %503 : vector<1x20xf32> to vector<8x20xf32>
    %506 = arith.mulf %504, %505 : vector<8x20xf32>
    %507 = arith.addf %501, %506 : vector<8x20xf32>
    %508 = arith.negf %507 : vector<8x20xf32>
    %509 = math.exp %508 : vector<8x20xf32>
    %cst_39 = arith.constant 1.000000e+00 : f32
    %510 = vector.broadcast %cst_39 : f32 to vector<8x20xf32>
    %511 = arith.addf %510, %509 : vector<8x20xf32>
    %512 = arith.divf %510, %511 : vector<8x20xf32>
    %513 = math.tanh %507 : vector<8x20xf32>
    %514 = vector.extract_strided_slice %512 {offsets = [0, 0], sizes = [8, 5], strides = [1, 1]} : vector<8x20xf32> to vector<8x5xf32>
    %515 = vector.extract_strided_slice %512 {offsets = [0, 5], sizes = [8, 5], strides = [1, 1]} : vector<8x20xf32> to vector<8x5xf32>
    %516 = vector.extract_strided_slice %513 {offsets = [0, 10], sizes = [8, 5], strides = [1, 1]} : vector<8x20xf32> to vector<8x5xf32>
    %517 = vector.extract_strided_slice %512 {offsets = [0, 15], sizes = [8, 5], strides = [1, 1]} : vector<8x20xf32> to vector<8x5xf32>
    %518 = arith.mulf %515, %474 : vector<8x5xf32>
    %519 = arith.mulf %514, %516 : vector<8x5xf32>
    %520 = arith.addf %518, %519 : vector<8x5xf32>
    %521 = math.tanh %520 : vector<8x5xf32>
    %522 = arith.mulf %517, %521 : vector<8x5xf32>
    %c88 = arith.constant 88 : index
    %c0_40 = arith.constant 0 : index
    %523 = vector.load %arg9[%c88, %c0_40] : memref<128x20xf32, #tpu.memory_space<vmem>>, vector<8x20xf32>
    %524 = vector.extract_strided_slice %522 {offsets = [0, 0], sizes = [8, 1], strides = [1, 1]} : vector<8x5xf32> to vector<8x1xf32>
    %525 = vector.extract_strided_slice %14 {offsets = [0, 0], sizes = [1, 20], strides = [1, 1]} : vector<5x20xf32> to vector<1x20xf32>
    %526 = vector.broadcast %524 : vector<8x1xf32> to vector<8x20xf32>
    %527 = vector.broadcast %525 : vector<1x20xf32> to vector<8x20xf32>
    %528 = arith.mulf %526, %527 : vector<8x20xf32>
    %529 = arith.addf %523, %528 : vector<8x20xf32>
    %530 = vector.extract_strided_slice %522 {offsets = [0, 1], sizes = [8, 1], strides = [1, 1]} : vector<8x5xf32> to vector<8x1xf32>
    %531 = vector.extract_strided_slice %14 {offsets = [1, 0], sizes = [1, 20], strides = [1, 1]} : vector<5x20xf32> to vector<1x20xf32>
    %532 = vector.broadcast %530 : vector<8x1xf32> to vector<8x20xf32>
    %533 = vector.broadcast %531 : vector<1x20xf32> to vector<8x20xf32>
    %534 = arith.mulf %532, %533 : vector<8x20xf32>
    %535 = arith.addf %529, %534 : vector<8x20xf32>
    %536 = vector.extract_strided_slice %522 {offsets = [0, 2], sizes = [8, 1], strides = [1, 1]} : vector<8x5xf32> to vector<8x1xf32>
    %537 = vector.extract_strided_slice %14 {offsets = [2, 0], sizes = [1, 20], strides = [1, 1]} : vector<5x20xf32> to vector<1x20xf32>
    %538 = vector.broadcast %536 : vector<8x1xf32> to vector<8x20xf32>
    %539 = vector.broadcast %537 : vector<1x20xf32> to vector<8x20xf32>
    %540 = arith.mulf %538, %539 : vector<8x20xf32>
    %541 = arith.addf %535, %540 : vector<8x20xf32>
    %542 = vector.extract_strided_slice %522 {offsets = [0, 3], sizes = [8, 1], strides = [1, 1]} : vector<8x5xf32> to vector<8x1xf32>
    %543 = vector.extract_strided_slice %14 {offsets = [3, 0], sizes = [1, 20], strides = [1, 1]} : vector<5x20xf32> to vector<1x20xf32>
    %544 = vector.broadcast %542 : vector<8x1xf32> to vector<8x20xf32>
    %545 = vector.broadcast %543 : vector<1x20xf32> to vector<8x20xf32>
    %546 = arith.mulf %544, %545 : vector<8x20xf32>
    %547 = arith.addf %541, %546 : vector<8x20xf32>
    %548 = vector.extract_strided_slice %522 {offsets = [0, 4], sizes = [8, 1], strides = [1, 1]} : vector<8x5xf32> to vector<8x1xf32>
    %549 = vector.extract_strided_slice %14 {offsets = [4, 0], sizes = [1, 20], strides = [1, 1]} : vector<5x20xf32> to vector<1x20xf32>
    %550 = vector.broadcast %548 : vector<8x1xf32> to vector<8x20xf32>
    %551 = vector.broadcast %549 : vector<1x20xf32> to vector<8x20xf32>
    %552 = arith.mulf %550, %551 : vector<8x20xf32>
    %553 = arith.addf %547, %552 : vector<8x20xf32>
    %554 = arith.negf %553 : vector<8x20xf32>
    %555 = math.exp %554 : vector<8x20xf32>
    %cst_41 = arith.constant 1.000000e+00 : f32
    %556 = vector.broadcast %cst_41 : f32 to vector<8x20xf32>
    %557 = arith.addf %556, %555 : vector<8x20xf32>
    %558 = arith.divf %556, %557 : vector<8x20xf32>
    %559 = math.tanh %553 : vector<8x20xf32>
    %560 = vector.extract_strided_slice %558 {offsets = [0, 0], sizes = [8, 5], strides = [1, 1]} : vector<8x20xf32> to vector<8x5xf32>
    %561 = vector.extract_strided_slice %558 {offsets = [0, 5], sizes = [8, 5], strides = [1, 1]} : vector<8x20xf32> to vector<8x5xf32>
    %562 = vector.extract_strided_slice %559 {offsets = [0, 10], sizes = [8, 5], strides = [1, 1]} : vector<8x20xf32> to vector<8x5xf32>
    %563 = vector.extract_strided_slice %558 {offsets = [0, 15], sizes = [8, 5], strides = [1, 1]} : vector<8x20xf32> to vector<8x5xf32>
    %564 = arith.mulf %561, %520 : vector<8x5xf32>
    %565 = arith.mulf %560, %562 : vector<8x5xf32>
    %566 = arith.addf %564, %565 : vector<8x5xf32>
    %567 = math.tanh %566 : vector<8x5xf32>
    %568 = arith.mulf %563, %567 : vector<8x5xf32>
    %c96 = arith.constant 96 : index
    %c0_42 = arith.constant 0 : index
    %569 = vector.load %arg9[%c96, %c0_42] : memref<128x20xf32, #tpu.memory_space<vmem>>, vector<8x20xf32>
    %570 = vector.extract_strided_slice %568 {offsets = [0, 0], sizes = [8, 1], strides = [1, 1]} : vector<8x5xf32> to vector<8x1xf32>
    %571 = vector.extract_strided_slice %14 {offsets = [0, 0], sizes = [1, 20], strides = [1, 1]} : vector<5x20xf32> to vector<1x20xf32>
    %572 = vector.broadcast %570 : vector<8x1xf32> to vector<8x20xf32>
    %573 = vector.broadcast %571 : vector<1x20xf32> to vector<8x20xf32>
    %574 = arith.mulf %572, %573 : vector<8x20xf32>
    %575 = arith.addf %569, %574 : vector<8x20xf32>
    %576 = vector.extract_strided_slice %568 {offsets = [0, 1], sizes = [8, 1], strides = [1, 1]} : vector<8x5xf32> to vector<8x1xf32>
    %577 = vector.extract_strided_slice %14 {offsets = [1, 0], sizes = [1, 20], strides = [1, 1]} : vector<5x20xf32> to vector<1x20xf32>
    %578 = vector.broadcast %576 : vector<8x1xf32> to vector<8x20xf32>
    %579 = vector.broadcast %577 : vector<1x20xf32> to vector<8x20xf32>
    %580 = arith.mulf %578, %579 : vector<8x20xf32>
    %581 = arith.addf %575, %580 : vector<8x20xf32>
    %582 = vector.extract_strided_slice %568 {offsets = [0, 2], sizes = [8, 1], strides = [1, 1]} : vector<8x5xf32> to vector<8x1xf32>
    %583 = vector.extract_strided_slice %14 {offsets = [2, 0], sizes = [1, 20], strides = [1, 1]} : vector<5x20xf32> to vector<1x20xf32>
    %584 = vector.broadcast %582 : vector<8x1xf32> to vector<8x20xf32>
    %585 = vector.broadcast %583 : vector<1x20xf32> to vector<8x20xf32>
    %586 = arith.mulf %584, %585 : vector<8x20xf32>
    %587 = arith.addf %581, %586 : vector<8x20xf32>
    %588 = vector.extract_strided_slice %568 {offsets = [0, 3], sizes = [8, 1], strides = [1, 1]} : vector<8x5xf32> to vector<8x1xf32>
    %589 = vector.extract_strided_slice %14 {offsets = [3, 0], sizes = [1, 20], strides = [1, 1]} : vector<5x20xf32> to vector<1x20xf32>
    %590 = vector.broadcast %588 : vector<8x1xf32> to vector<8x20xf32>
    %591 = vector.broadcast %589 : vector<1x20xf32> to vector<8x20xf32>
    %592 = arith.mulf %590, %591 : vector<8x20xf32>
    %593 = arith.addf %587, %592 : vector<8x20xf32>
    %594 = vector.extract_strided_slice %568 {offsets = [0, 4], sizes = [8, 1], strides = [1, 1]} : vector<8x5xf32> to vector<8x1xf32>
    %595 = vector.extract_strided_slice %14 {offsets = [4, 0], sizes = [1, 20], strides = [1, 1]} : vector<5x20xf32> to vector<1x20xf32>
    %596 = vector.broadcast %594 : vector<8x1xf32> to vector<8x20xf32>
    %597 = vector.broadcast %595 : vector<1x20xf32> to vector<8x20xf32>
    %598 = arith.mulf %596, %597 : vector<8x20xf32>
    %599 = arith.addf %593, %598 : vector<8x20xf32>
    %600 = arith.negf %599 : vector<8x20xf32>
    %601 = math.exp %600 : vector<8x20xf32>
    %cst_43 = arith.constant 1.000000e+00 : f32
    %602 = vector.broadcast %cst_43 : f32 to vector<8x20xf32>
    %603 = arith.addf %602, %601 : vector<8x20xf32>
    %604 = arith.divf %602, %603 : vector<8x20xf32>
    %605 = math.tanh %599 : vector<8x20xf32>
    %606 = vector.extract_strided_slice %604 {offsets = [0, 0], sizes = [8, 5], strides = [1, 1]} : vector<8x20xf32> to vector<8x5xf32>
    %607 = vector.extract_strided_slice %604 {offsets = [0, 5], sizes = [8, 5], strides = [1, 1]} : vector<8x20xf32> to vector<8x5xf32>
    %608 = vector.extract_strided_slice %605 {offsets = [0, 10], sizes = [8, 5], strides = [1, 1]} : vector<8x20xf32> to vector<8x5xf32>
    %609 = vector.extract_strided_slice %604 {offsets = [0, 15], sizes = [8, 5], strides = [1, 1]} : vector<8x20xf32> to vector<8x5xf32>
    %610 = arith.mulf %607, %566 : vector<8x5xf32>
    %611 = arith.mulf %606, %608 : vector<8x5xf32>
    %612 = arith.addf %610, %611 : vector<8x5xf32>
    %613 = math.tanh %612 : vector<8x5xf32>
    %614 = arith.mulf %609, %613 : vector<8x5xf32>
    %c104 = arith.constant 104 : index
    %c0_44 = arith.constant 0 : index
    %615 = vector.load %arg9[%c104, %c0_44] : memref<128x20xf32, #tpu.memory_space<vmem>>, vector<8x20xf32>
    %616 = vector.extract_strided_slice %614 {offsets = [0, 0], sizes = [8, 1], strides = [1, 1]} : vector<8x5xf32> to vector<8x1xf32>
    %617 = vector.extract_strided_slice %14 {offsets = [0, 0], sizes = [1, 20], strides = [1, 1]} : vector<5x20xf32> to vector<1x20xf32>
    %618 = vector.broadcast %616 : vector<8x1xf32> to vector<8x20xf32>
    %619 = vector.broadcast %617 : vector<1x20xf32> to vector<8x20xf32>
    %620 = arith.mulf %618, %619 : vector<8x20xf32>
    %621 = arith.addf %615, %620 : vector<8x20xf32>
    %622 = vector.extract_strided_slice %614 {offsets = [0, 1], sizes = [8, 1], strides = [1, 1]} : vector<8x5xf32> to vector<8x1xf32>
    %623 = vector.extract_strided_slice %14 {offsets = [1, 0], sizes = [1, 20], strides = [1, 1]} : vector<5x20xf32> to vector<1x20xf32>
    %624 = vector.broadcast %622 : vector<8x1xf32> to vector<8x20xf32>
    %625 = vector.broadcast %623 : vector<1x20xf32> to vector<8x20xf32>
    %626 = arith.mulf %624, %625 : vector<8x20xf32>
    %627 = arith.addf %621, %626 : vector<8x20xf32>
    %628 = vector.extract_strided_slice %614 {offsets = [0, 2], sizes = [8, 1], strides = [1, 1]} : vector<8x5xf32> to vector<8x1xf32>
    %629 = vector.extract_strided_slice %14 {offsets = [2, 0], sizes = [1, 20], strides = [1, 1]} : vector<5x20xf32> to vector<1x20xf32>
    %630 = vector.broadcast %628 : vector<8x1xf32> to vector<8x20xf32>
    %631 = vector.broadcast %629 : vector<1x20xf32> to vector<8x20xf32>
    %632 = arith.mulf %630, %631 : vector<8x20xf32>
    %633 = arith.addf %627, %632 : vector<8x20xf32>
    %634 = vector.extract_strided_slice %614 {offsets = [0, 3], sizes = [8, 1], strides = [1, 1]} : vector<8x5xf32> to vector<8x1xf32>
    %635 = vector.extract_strided_slice %14 {offsets = [3, 0], sizes = [1, 20], strides = [1, 1]} : vector<5x20xf32> to vector<1x20xf32>
    %636 = vector.broadcast %634 : vector<8x1xf32> to vector<8x20xf32>
    %637 = vector.broadcast %635 : vector<1x20xf32> to vector<8x20xf32>
    %638 = arith.mulf %636, %637 : vector<8x20xf32>
    %639 = arith.addf %633, %638 : vector<8x20xf32>
    %640 = vector.extract_strided_slice %614 {offsets = [0, 4], sizes = [8, 1], strides = [1, 1]} : vector<8x5xf32> to vector<8x1xf32>
    %641 = vector.extract_strided_slice %14 {offsets = [4, 0], sizes = [1, 20], strides = [1, 1]} : vector<5x20xf32> to vector<1x20xf32>
    %642 = vector.broadcast %640 : vector<8x1xf32> to vector<8x20xf32>
    %643 = vector.broadcast %641 : vector<1x20xf32> to vector<8x20xf32>
    %644 = arith.mulf %642, %643 : vector<8x20xf32>
    %645 = arith.addf %639, %644 : vector<8x20xf32>
    %646 = arith.negf %645 : vector<8x20xf32>
    %647 = math.exp %646 : vector<8x20xf32>
    %cst_45 = arith.constant 1.000000e+00 : f32
    %648 = vector.broadcast %cst_45 : f32 to vector<8x20xf32>
    %649 = arith.addf %648, %647 : vector<8x20xf32>
    %650 = arith.divf %648, %649 : vector<8x20xf32>
    %651 = math.tanh %645 : vector<8x20xf32>
    %652 = vector.extract_strided_slice %650 {offsets = [0, 0], sizes = [8, 5], strides = [1, 1]} : vector<8x20xf32> to vector<8x5xf32>
    %653 = vector.extract_strided_slice %650 {offsets = [0, 5], sizes = [8, 5], strides = [1, 1]} : vector<8x20xf32> to vector<8x5xf32>
    %654 = vector.extract_strided_slice %651 {offsets = [0, 10], sizes = [8, 5], strides = [1, 1]} : vector<8x20xf32> to vector<8x5xf32>
    %655 = vector.extract_strided_slice %650 {offsets = [0, 15], sizes = [8, 5], strides = [1, 1]} : vector<8x20xf32> to vector<8x5xf32>
    %656 = arith.mulf %653, %612 : vector<8x5xf32>
    %657 = arith.mulf %652, %654 : vector<8x5xf32>
    %658 = arith.addf %656, %657 : vector<8x5xf32>
    %659 = math.tanh %658 : vector<8x5xf32>
    %660 = arith.mulf %655, %659 : vector<8x5xf32>
    %c112 = arith.constant 112 : index
    %c0_46 = arith.constant 0 : index
    %661 = vector.load %arg9[%c112, %c0_46] : memref<128x20xf32, #tpu.memory_space<vmem>>, vector<8x20xf32>
    %662 = vector.extract_strided_slice %660 {offsets = [0, 0], sizes = [8, 1], strides = [1, 1]} : vector<8x5xf32> to vector<8x1xf32>
    %663 = vector.extract_strided_slice %14 {offsets = [0, 0], sizes = [1, 20], strides = [1, 1]} : vector<5x20xf32> to vector<1x20xf32>
    %664 = vector.broadcast %662 : vector<8x1xf32> to vector<8x20xf32>
    %665 = vector.broadcast %663 : vector<1x20xf32> to vector<8x20xf32>
    %666 = arith.mulf %664, %665 : vector<8x20xf32>
    %667 = arith.addf %661, %666 : vector<8x20xf32>
    %668 = vector.extract_strided_slice %660 {offsets = [0, 1], sizes = [8, 1], strides = [1, 1]} : vector<8x5xf32> to vector<8x1xf32>
    %669 = vector.extract_strided_slice %14 {offsets = [1, 0], sizes = [1, 20], strides = [1, 1]} : vector<5x20xf32> to vector<1x20xf32>
    %670 = vector.broadcast %668 : vector<8x1xf32> to vector<8x20xf32>
    %671 = vector.broadcast %669 : vector<1x20xf32> to vector<8x20xf32>
    %672 = arith.mulf %670, %671 : vector<8x20xf32>
    %673 = arith.addf %667, %672 : vector<8x20xf32>
    %674 = vector.extract_strided_slice %660 {offsets = [0, 2], sizes = [8, 1], strides = [1, 1]} : vector<8x5xf32> to vector<8x1xf32>
    %675 = vector.extract_strided_slice %14 {offsets = [2, 0], sizes = [1, 20], strides = [1, 1]} : vector<5x20xf32> to vector<1x20xf32>
    %676 = vector.broadcast %674 : vector<8x1xf32> to vector<8x20xf32>
    %677 = vector.broadcast %675 : vector<1x20xf32> to vector<8x20xf32>
    %678 = arith.mulf %676, %677 : vector<8x20xf32>
    %679 = arith.addf %673, %678 : vector<8x20xf32>
    %680 = vector.extract_strided_slice %660 {offsets = [0, 3], sizes = [8, 1], strides = [1, 1]} : vector<8x5xf32> to vector<8x1xf32>
    %681 = vector.extract_strided_slice %14 {offsets = [3, 0], sizes = [1, 20], strides = [1, 1]} : vector<5x20xf32> to vector<1x20xf32>
    %682 = vector.broadcast %680 : vector<8x1xf32> to vector<8x20xf32>
    %683 = vector.broadcast %681 : vector<1x20xf32> to vector<8x20xf32>
    %684 = arith.mulf %682, %683 : vector<8x20xf32>
    %685 = arith.addf %679, %684 : vector<8x20xf32>
    %686 = vector.extract_strided_slice %660 {offsets = [0, 4], sizes = [8, 1], strides = [1, 1]} : vector<8x5xf32> to vector<8x1xf32>
    %687 = vector.extract_strided_slice %14 {offsets = [4, 0], sizes = [1, 20], strides = [1, 1]} : vector<5x20xf32> to vector<1x20xf32>
    %688 = vector.broadcast %686 : vector<8x1xf32> to vector<8x20xf32>
    %689 = vector.broadcast %687 : vector<1x20xf32> to vector<8x20xf32>
    %690 = arith.mulf %688, %689 : vector<8x20xf32>
    %691 = arith.addf %685, %690 : vector<8x20xf32>
    %692 = arith.negf %691 : vector<8x20xf32>
    %693 = math.exp %692 : vector<8x20xf32>
    %cst_47 = arith.constant 1.000000e+00 : f32
    %694 = vector.broadcast %cst_47 : f32 to vector<8x20xf32>
    %695 = arith.addf %694, %693 : vector<8x20xf32>
    %696 = arith.divf %694, %695 : vector<8x20xf32>
    %697 = math.tanh %691 : vector<8x20xf32>
    %698 = vector.extract_strided_slice %696 {offsets = [0, 0], sizes = [8, 5], strides = [1, 1]} : vector<8x20xf32> to vector<8x5xf32>
    %699 = vector.extract_strided_slice %696 {offsets = [0, 5], sizes = [8, 5], strides = [1, 1]} : vector<8x20xf32> to vector<8x5xf32>
    %700 = vector.extract_strided_slice %697 {offsets = [0, 10], sizes = [8, 5], strides = [1, 1]} : vector<8x20xf32> to vector<8x5xf32>
    %701 = vector.extract_strided_slice %696 {offsets = [0, 15], sizes = [8, 5], strides = [1, 1]} : vector<8x20xf32> to vector<8x5xf32>
    %702 = arith.mulf %699, %658 : vector<8x5xf32>
    %703 = arith.mulf %698, %700 : vector<8x5xf32>
    %704 = arith.addf %702, %703 : vector<8x5xf32>
    %705 = math.tanh %704 : vector<8x5xf32>
    %706 = arith.mulf %701, %705 : vector<8x5xf32>
    %c120 = arith.constant 120 : index
    %c0_48 = arith.constant 0 : index
    %707 = vector.load %arg9[%c120, %c0_48] : memref<128x20xf32, #tpu.memory_space<vmem>>, vector<8x20xf32>
    %708 = vector.extract_strided_slice %706 {offsets = [0, 0], sizes = [8, 1], strides = [1, 1]} : vector<8x5xf32> to vector<8x1xf32>
    %709 = vector.extract_strided_slice %14 {offsets = [0, 0], sizes = [1, 20], strides = [1, 1]} : vector<5x20xf32> to vector<1x20xf32>
    %710 = vector.broadcast %708 : vector<8x1xf32> to vector<8x20xf32>
    %711 = vector.broadcast %709 : vector<1x20xf32> to vector<8x20xf32>
    %712 = arith.mulf %710, %711 : vector<8x20xf32>
    %713 = arith.addf %707, %712 : vector<8x20xf32>
    %714 = vector.extract_strided_slice %706 {offsets = [0, 1], sizes = [8, 1], strides = [1, 1]} : vector<8x5xf32> to vector<8x1xf32>
    %715 = vector.extract_strided_slice %14 {offsets = [1, 0], sizes = [1, 20], strides = [1, 1]} : vector<5x20xf32> to vector<1x20xf32>
    %716 = vector.broadcast %714 : vector<8x1xf32> to vector<8x20xf32>
    %717 = vector.broadcast %715 : vector<1x20xf32> to vector<8x20xf32>
    %718 = arith.mulf %716, %717 : vector<8x20xf32>
    %719 = arith.addf %713, %718 : vector<8x20xf32>
    %720 = vector.extract_strided_slice %706 {offsets = [0, 2], sizes = [8, 1], strides = [1, 1]} : vector<8x5xf32> to vector<8x1xf32>
    %721 = vector.extract_strided_slice %14 {offsets = [2, 0], sizes = [1, 20], strides = [1, 1]} : vector<5x20xf32> to vector<1x20xf32>
    %722 = vector.broadcast %720 : vector<8x1xf32> to vector<8x20xf32>
    %723 = vector.broadcast %721 : vector<1x20xf32> to vector<8x20xf32>
    %724 = arith.mulf %722, %723 : vector<8x20xf32>
    %725 = arith.addf %719, %724 : vector<8x20xf32>
    %726 = vector.extract_strided_slice %706 {offsets = [0, 3], sizes = [8, 1], strides = [1, 1]} : vector<8x5xf32> to vector<8x1xf32>
    %727 = vector.extract_strided_slice %14 {offsets = [3, 0], sizes = [1, 20], strides = [1, 1]} : vector<5x20xf32> to vector<1x20xf32>
    %728 = vector.broadcast %726 : vector<8x1xf32> to vector<8x20xf32>
    %729 = vector.broadcast %727 : vector<1x20xf32> to vector<8x20xf32>
    %730 = arith.mulf %728, %729 : vector<8x20xf32>
    %731 = arith.addf %725, %730 : vector<8x20xf32>
    %732 = vector.extract_strided_slice %706 {offsets = [0, 4], sizes = [8, 1], strides = [1, 1]} : vector<8x5xf32> to vector<8x1xf32>
    %733 = vector.extract_strided_slice %14 {offsets = [4, 0], sizes = [1, 20], strides = [1, 1]} : vector<5x20xf32> to vector<1x20xf32>
    %734 = vector.broadcast %732 : vector<8x1xf32> to vector<8x20xf32>
    %735 = vector.broadcast %733 : vector<1x20xf32> to vector<8x20xf32>
    %736 = arith.mulf %734, %735 : vector<8x20xf32>
    %737 = arith.addf %731, %736 : vector<8x20xf32>
    %738 = arith.negf %737 : vector<8x20xf32>
    %739 = math.exp %738 : vector<8x20xf32>
    %cst_49 = arith.constant 1.000000e+00 : f32
    %740 = vector.broadcast %cst_49 : f32 to vector<8x20xf32>
    %741 = arith.addf %740, %739 : vector<8x20xf32>
    %742 = arith.divf %740, %741 : vector<8x20xf32>
    %743 = math.tanh %737 : vector<8x20xf32>
    %744 = vector.extract_strided_slice %742 {offsets = [0, 0], sizes = [8, 5], strides = [1, 1]} : vector<8x20xf32> to vector<8x5xf32>
    %745 = vector.extract_strided_slice %742 {offsets = [0, 5], sizes = [8, 5], strides = [1, 1]} : vector<8x20xf32> to vector<8x5xf32>
    %746 = vector.extract_strided_slice %743 {offsets = [0, 10], sizes = [8, 5], strides = [1, 1]} : vector<8x20xf32> to vector<8x5xf32>
    %747 = vector.extract_strided_slice %742 {offsets = [0, 15], sizes = [8, 5], strides = [1, 1]} : vector<8x20xf32> to vector<8x5xf32>
    %748 = arith.mulf %745, %704 : vector<8x5xf32>
    %749 = arith.mulf %744, %746 : vector<8x5xf32>
    %750 = arith.addf %748, %749 : vector<8x5xf32>
    %751 = math.tanh %750 : vector<8x5xf32>
    %752 = arith.mulf %747, %751 : vector<8x5xf32>
    %c0_50 = arith.constant 0 : index
    %c0_51 = arith.constant 0 : index
    %753 = vector.load %arg6[%c0_50, %c0_51] : memref<5x1xf32, #tpu.memory_space<vmem>>, vector<5x1xf32>
    %cst_52 = arith.constant dense<0.000000e+00> : vector<8x1xf32>
    %754 = tpu.matmul %752, %753, %cst_52 {dimension_numbers = #tpu.dot_dimension_numbers<[1], [0], [0], [1], [0, 0, 1, 1], [], []>} : vector<8x5xf32>, vector<5x1xf32>, vector<8x1xf32> -> vector<8x1xf32>
    %c0_53 = arith.constant 0 : index
    %c0_54 = arith.constant 0 : index
    %755 = vector.load %arg7[%c0_53, %c0_54] : memref<1x1xf32, #tpu.memory_space<vmem>>, vector<1x1xf32>
    %756 = vector.broadcast %755 : vector<1x1xf32> to vector<8x1xf32>
    %757 = arith.addf %754, %756 : vector<8x1xf32>
    %758 = math.tanh %757 : vector<8x1xf32>
    %c0_55 = arith.constant 0 : index
    %c0_56 = arith.constant 0 : index
    %759 = vector.load %arg8[%c0_55, %c0_56] : memref<8x1xf32, #tpu.memory_space<vmem>>, vector<8x1xf32>
    tpu.vector_store %arg8[%c0_55, %c0_56], %758 {strides = array<i32>} : memref<8x1xf32, #tpu.memory_space<vmem>>, vector<8x1xf32>,
    return
  }
}

</mosaic_0001>

<llo_original>
// kernel: tpu_custom_call.1
$region0: #{tpu_custom_call.1}
  #allocation0 [shape = 'u32[]', space=smem, size = 0x4, offset = 0x4, fixed_abs, tag = 'smem constant byte address 0x4 - core index']
  #allocation1 [shape = 'u32[144,128]{1,0:T(1,128)}', space=vmem, size = 0x12000, scoped, tag = 'internal scratch']
  #allocation2 [shape = 'f32[128,20]{1,0:T(8,128)}', space=vmem, size = 0x10000, scoped, tag = 'scratch operand']
  #allocation3 [shape = 'f32[1,1]{1,0:T(1,128)S(1)}', space=vmem, size = 0x200, scoped, tag = 'scoped memory for tpu_custom_call.1']
  %s0 = inlined_call_operand.vmem [shape: f32[128,4], index: 0, kind: input, shape index: {}]
  %s1 = inlined_call_operand.vmem [shape: f32[4,15], index: 1, kind: input, shape index: {}]
  %s2 = inlined_call_operand.vmem [shape: f32[1,15], index: 2, kind: input, shape index: {}]
  %s3 = inlined_call_operand.vmem [shape: f32[15,20], index: 3, kind: input, shape index: {}]
  %s4 = inlined_call_operand.vmem [shape: f32[5,20], index: 4, kind: input, shape index: {}]
  %s5 = inlined_call_operand.vmem [shape: f32[1,20], index: 5, kind: input, shape index: {}]
  %s6 = inlined_call_operand.vmem [shape: f32[5,1], index: 6, kind: input, shape index: {}]
  %s7 = inlined_call_operand.<no memory space> [shape: f32[1,1], index: 7, kind: input, shape index: {}]
  %s8 = inlined_call_operand.vmem [shape: f32[8,1], index: 8, kind: output, shape index: {}]
  %s9 = sld [smem:[#allocation0]]
  $region42: #{tpu_custom_call.1} parent=0
    _
  %s11 = ssub.s32 1, %s9
  %s12 = scalar_select 0, %s11, %s9
  %v13 = vstv %s7
  %14 = vst [vmem:[#allocation3] sm:$0x1] %v13
  // Predicated region
  $region2: #{tpu_custom_call.1} parent=0 // pred_check
    _
  $region3: #{tpu_custom_call.1} parent=0 // pred_check_branch
    %16 = sbr.rel (0) target = $region5
  $region4: #{tpu_custom_call.1} parent=0 // pred_region
    _
  $region5: #{tpu_custom_call.1} parent=0 // pred_fallthru
    _
  // Predicated region
  $region6: #{tpu_custom_call.1} parent=0 // pred_check
    _
  $region7: #{tpu_custom_call.1} parent=0 // pred_check_branch
    %18 = sbr.rel (0) target = $region9
  $region8: #{tpu_custom_call.1} parent=0 // pred_region
    _
  $region9: #{tpu_custom_call.1} parent=0 // pred_fallthru
    _
  // Predicated region
  $region10: #{tpu_custom_call.1} parent=0 // pred_check
    _
  $region11: #{tpu_custom_call.1} parent=0 // pred_check_branch
    %20 = sbr.rel (0) target = $region13
  $region12: #{tpu_custom_call.1} parent=0 // pred_region
    _
  $region13: #{tpu_custom_call.1} parent=0 // pred_fallthru
    _
  // Predicated region
  $region14: #{tpu_custom_call.1} parent=0 // pred_check
    _
  $region15: #{tpu_custom_call.1} parent=0 // pred_check_branch
    %22 = sbr.rel (0) target = $region17
  $region16: #{tpu_custom_call.1} parent=0 // pred_region
    _
  $region17: #{tpu_custom_call.1} parent=0 // pred_fallthru
    _
  // Predicated region
  $region18: #{tpu_custom_call.1} parent=0 // pred_check
    _
  $region19: #{tpu_custom_call.1} parent=0 // pred_check_branch
    %24 = sbr.rel (0) target = $region21
  $region20: #{tpu_custom_call.1} parent=0 // pred_region
    _
  $region21: #{tpu_custom_call.1} parent=0 // pred_fallthru
    _
  // Predicated region
  $region22: #{tpu_custom_call.1} parent=0 // pred_check
    _
  $region23: #{tpu_custom_call.1} parent=0 // pred_check_branch
    %26 = sbr.rel (0) target = $region25
  $region24: #{tpu_custom_call.1} parent=0 // pred_region
    _
  $region25: #{tpu_custom_call.1} parent=0 // pred_fallthru
    _
  // Predicated region
  $region26: #{tpu_custom_call.1} parent=0 // pred_check
    _
  $region27: #{tpu_custom_call.1} parent=0 // pred_check_branch
    %28 = sbr.rel (0) target = $region29
  $region28: #{tpu_custom_call.1} parent=0 // pred_region
    _
  $region29: #{tpu_custom_call.1} parent=0 // pred_fallthru
    _
  // Predicated region
  $region30: #{tpu_custom_call.1} parent=0 // pred_check
    _
  $region31: #{tpu_custom_call.1} parent=0 // pred_check_branch
    %30 = sbr.rel (0) target = $region33
  $region32: #{tpu_custom_call.1} parent=0 // pred_region
    _
  $region33: #{tpu_custom_call.1} parent=0 // pred_fallthru
    _
  %v31 = vld [vmem:[%s0] sm:$0xff]
  %v32 = vld [vmem:[%s0 + $0x8] sm:$0xff]
  %v33 = vld [vmem:[%s0 + $0x10] sm:$0xff]
  %v34 = vld [vmem:[%s0 + $0x18] sm:$0xff]
  %v35 = vld [vmem:[%s0 + $0x20] sm:$0xff]
  %v36 = vld [vmem:[%s0 + $0x28] sm:$0xff]
  %v37 = vld [vmem:[%s0 + $0x30] sm:$0xff]
  %v38 = vld [vmem:[%s0 + $0x38] sm:$0xff]
  %v39 = vld [vmem:[%s0 + $0x40] sm:$0xff]
  %v40 = vld [vmem:[%s0 + $0x48] sm:$0xff]
  %v41 = vld [vmem:[%s0 + $0x50] sm:$0xff]
  %v42 = vld [vmem:[%s0 + $0x58] sm:$0xff]
  %v43 = vld [vmem:[%s0 + $0x60] sm:$0xff]
  %v44 = vld [vmem:[%s0 + $0x68] sm:$0xff]
  %v45 = vld [vmem:[%s0 + $0x70] sm:$0xff]
  %v46 = vld [vmem:[%s0 + $0x78] sm:$0xff]
  %v47 = vld [vmem:[%s1] sm:$0xf]
  %v48 = vld [vmem:[%s2] sm:$0x1]
  %v50 = vlaneseq
  %v51 = vshrl.u32 %v50, 7
  %v52 = vsub.s32 0, %v51
  %v53 = vrot.slane %v48, %v52
  %vm55 = vcmask 31744
  %v57 = vsel %vm55, %v31, 0
  %v60 = vsel %vm55, %v32, 0
  %v63 = vsel %vm55, %v33, 0
  %v66 = vsel %vm55, %v34, 0
  %v69 = vsel %vm55, %v35, 0
  %v72 = vsel %vm55, %v36, 0
  %v75 = vsel %vm55, %v37, 0
  %v78 = vsel %vm55, %v38, 0
  %v81 = vsel %vm55, %v39, 0
  %v84 = vsel %vm55, %v40, 0
  %v87 = vsel %vm55, %v41, 0
  %v90 = vsel %vm55, %v42, 0
  %v93 = vsel %vm55, %v43, 0
  %v96 = vsel %vm55, %v44, 0
  %v99 = vsel %vm55, %v45, 0
  %v102 = vsel %vm55, %v46, 0
  %vm104 = vcmask 1043456
  %v106 = vsel %vm104, %v47, 0
  %108 = vmatprep.subr.mxu0 0.0
  %109 = vmatpush1.msra.mxu0 %v106
  %110 = vmatprep.subr.mxu0 0.0
  %111 = vmatpush1.msra.mxu0 0.0
  %112 = vmatprep.subr.mxu0 0.0
  %113 = vmatpush1.msra.mxu0 0.0
  %114 = vmatprep.subr.mxu0 0.0
  %115 = vmatpush1.msra.mxu0 0.0
  %116 = vmatprep.subr.mxu0 0.0
  %117 = vmatpush1.msra.mxu0 0.0
  %118 = vmatprep.subr.mxu0 0.0
  %119 = vmatpush1.msra.mxu0 0.0
  %120 = vmatprep.subr.mxu0 0.0
  %121 = vmatpush1.msra.mxu0 0.0
  %122 = vmatprep.subr.mxu0 0.0
  %123 = vmatpush1.msra.mxu0 0.0
  %124 = vmatprep.subr.mxu0 0.0
  %125 = vmatpush1.msra.mxu0 0.0
  %126 = vmatprep.subr.mxu0 0.0
  %127 = vmatpush1.msra.mxu0 0.0
  %128 = vmatprep.subr.mxu0 0.0
  %129 = vmatpush1.msra.mxu0 0.0
  %130 = vmatprep.subr.mxu0 0.0
  %131 = vmatpush1.msra.mxu0 0.0
  %132 = vmatprep.subr.mxu0 0.0
  %133 = vmatpush1.msra.mxu0 0.0
  %134 = vmatprep.subr.mxu0 0.0
  %135 = vmatpush1.msra.mxu0 0.0
  %136 = vmatprep.subr.mxu0 0.0
  %137 = vmatpush1.msra.mxu0 0.0
  %138 = vmatprep.subr.mxu0 0.0
  %139 = vmatpush1.msra.mxu0 0.0
  %140 = vmatprep.subr.mxu0 0.0
  %141 = vmatpush1.msra.mxu0 0.0
  %142 = vmatprep.subr.mxu0 0.0
  %143 = vmatpush1.msra.mxu0 0.0
  %144 = vmatprep.subr.mxu0 0.0
  %145 = vmatpush1.msra.mxu0 0.0
  %146 = vmatprep.subr.mxu0 0.0
  %147 = vmatpush1.msra.mxu0 0.0
  %148 = vmatprep.subr.mxu0 0.0
  %149 = vmatpush1.msra.mxu0 0.0
  %150 = vmatprep.subr.mxu0 0.0
  %151 = vmatpush1.msra.mxu0 0.0
  %152 = vmatprep.subr.mxu0 0.0
  %153 = vmatpush1.msra.mxu0 0.0
  %154 = vmatprep.subr.mxu0 0.0
  %155 = vmatpush1.msra.mxu0 0.0
  %156 = vmatprep.subr.mxu0 0.0
  %157 = vmatpush1.msra.mxu0 0.0
  %158 = vmatprep.subr.mxu0 0.0
  %159 = vmatpush1.msra.mxu0 0.0
  %160 = vmatprep.subr.mxu0 0.0
  %161 = vmatpush1.msra.mxu0 0.0
  %162 = vmatprep.subr.mxu0 0.0
  %163 = vmatpush1.msra.mxu0 0.0
  %164 = vmatprep.subr.mxu0 0.0
  %165 = vmatpush1.msra.mxu0 0.0
  %166 = vmatprep.subr.mxu0 0.0
  %167 = vmatpush1.msra.mxu0 0.0
  %168 = vmatprep.subr.mxu0 0.0
  %169 = vmatpush1.msra.mxu0 0.0
  %170 = vmatprep.subr.mxu0 0.0
  %171 = vmatpush1.msra.mxu0 0.0
  %172 = vmatprep.mubr.f32.mxu0 0.0
  %173 = vmatmul.mubr.f32.gmra.mrb[0].mxu0 %v57
  %v174 = vpop.f32.mrb[0].mxu0
  %v175 = vadd.f32 %v53, %v174
  %v176 = vpop.f32.mrb[0].mxu0
  %177 = vmatprep.mubr.f32.mxu0 0.0
  %178 = vmatmul.mubr.f32.gmra.mrb[0].mxu0 %v60
  %v179 = vpop.f32.mrb[0].mxu0
  %v180 = vadd.f32 %v53, %v179
  %v181 = vpop.f32.mrb[0].mxu0
  %182 = vmatprep.mubr.f32.mxu0 0.0
  %183 = vmatmul.mubr.f32.gmra.mrb[0].mxu0 %v63
  %v184 = vpop.f32.mrb[0].mxu0
  %v185 = vadd.f32 %v53, %v184
  %v186 = vpop.f32.mrb[0].mxu0
  %187 = vmatprep.mubr.f32.mxu0 0.0
  %188 = vmatmul.mubr.f32.gmra.mrb[0].mxu0 %v66
  %v189 = vpop.f32.mrb[0].mxu0
  %v190 = vadd.f32 %v53, %v189
  %v191 = vpop.f32.mrb[0].mxu0
  %192 = vmatprep.mubr.f32.mxu0 0.0
  %193 = vmatmul.mubr.f32.gmra.mrb[0].mxu0 %v69
  %v194 = vpop.f32.mrb[0].mxu0
  %v195 = vadd.f32 %v53, %v194
  %v196 = vpop.f32.mrb[0].mxu0
  %197 = vmatprep.mubr.f32.mxu0 0.0
  %198 = vmatmul.mubr.f32.gmra.mrb[0].mxu0 %v72
  %v199 = vpop.f32.mrb[0].mxu0
  %v200 = vadd.f32 %v53, %v199
  %v201 = vpop.f32.mrb[0].mxu0
  %202 = vmatprep.mubr.f32.mxu0 0.0
  %203 = vmatmul.mubr.f32.gmra.mrb[0].mxu0 %v75
  %v204 = vpop.f32.mrb[0].mxu0
  %v205 = vadd.f32 %v53, %v204
  %v206 = vpop.f32.mrb[0].mxu0
  %207 = vmatprep.mubr.f32.mxu0 0.0
  %208 = vmatmul.mubr.f32.gmra.mrb[0].mxu0 %v78
  %v209 = vpop.f32.mrb[0].mxu0
  %v210 = vadd.f32 %v53, %v209
  %v211 = vpop.f32.mrb[0].mxu0
  %212 = vmatprep.mubr.f32.mxu0 0.0
  %213 = vmatmul.mubr.f32.gmra.mrb[0].mxu0 %v81
  %v214 = vpop.f32.mrb[0].mxu0
  %v215 = vadd.f32 %v53, %v214
  %v216 = vpop.f32.mrb[0].mxu0
  %217 = vmatprep.mubr.f32.mxu0 0.0
  %218 = vmatmul.mubr.f32.gmra.mrb[0].mxu0 %v84
  %v219 = vpop.f32.mrb[0].mxu0
  %v220 = vadd.f32 %v53, %v219
  %v221 = vpop.f32.mrb[0].mxu0
  %222 = vmatprep.mubr.f32.mxu0 0.0
  %223 = vmatmul.mubr.f32.gmra.mrb[0].mxu0 %v87
  %v224 = vpop.f32.mrb[0].mxu0
  %v225 = vadd.f32 %v53, %v224
  %v226 = vpop.f32.mrb[0].mxu0
  %227 = vmatprep.mubr.f32.mxu0 0.0
  %228 = vmatmul.mubr.f32.gmra.mrb[0].mxu0 %v90
  %v229 = vpop.f32.mrb[0].mxu0
  %v230 = vadd.f32 %v53, %v229
  %v231 = vpop.f32.mrb[0].mxu0
  %232 = vmatprep.mubr.f32.mxu0 0.0
  %233 = vmatmul.mubr.f32.gmra.mrb[0].mxu0 %v93
  %v234 = vpop.f32.mrb[0].mxu0
  %v235 = vadd.f32 %v53, %v234
  %v236 = vpop.f32.mrb[0].mxu0
  %237 = vmatprep.mubr.f32.mxu0 0.0
  %238 = vmatmul.mubr.f32.gmra.mrb[0].mxu0 %v96
  %v239 = vpop.f32.mrb[0].mxu0
  %v240 = vadd.f32 %v53, %v239
  %v241 = vpop.f32.mrb[0].mxu0
  %242 = vmatprep.mubr.f32.mxu0 0.0
  %243 = vmatmul.mubr.f32.gmra.mrb[0].mxu0 %v99
  %v244 = vpop.f32.mrb[0].mxu0
  %v245 = vadd.f32 %v53, %v244
  %v246 = vpop.f32.mrb[0].mxu0
  %247 = vmatprep.mubr.f32.mxu0 0.0
  %248 = vmatmul.mubr.f32.gmra.mrb[0].mxu0 %v102
  %v249 = vpop.f32.mrb[0].mxu0
  %v250 = vadd.f32 %v53, %v249
  %v251 = vpop.f32.mrb[0].mxu0
  %252 = vdwg.mxu0
  %v253 = vmax.f32 %v175, 0.0
  %v254 = vmax.f32 %v180, 0.0
  %v255 = vmax.f32 %v185, 0.0
  %v256 = vmax.f32 %v190, 0.0
  %v257 = vmax.f32 %v195, 0.0
  %v258 = vmax.f32 %v200, 0.0
  %v259 = vmax.f32 %v205, 0.0
  %v260 = vmax.f32 %v210, 0.0
  %v261 = vmax.f32 %v215, 0.0
  %v262 = vmax.f32 %v220, 0.0
  %v263 = vmax.f32 %v225, 0.0
  %v264 = vmax.f32 %v230, 0.0
  %v265 = vmax.f32 %v235, 0.0
  %v266 = vmax.f32 %v240, 0.0
  %v267 = vmax.f32 %v245, 0.0
  %v268 = vmax.f32 %v250, 0.0
  %v269 = vld [vmem:[%s3] sm:$0xff]
  %v270 = vld [vmem:[%s3 + $0x8] sm:$0x7f]
  %v271 = vld [vmem:[%s5] sm:$0x1]
  %v273 = vlaneseq
  %v274 = vshrl.u32 %v273, 7
  %v275 = vsub.s32 0, %v274
  %v276 = vrot.slane %v271, %v275
  %vm278 = vcmask 121856
  %v280 = vsel %vm278, %v253, 0
  %v283 = vsel %vm278, %v254, 0
  %v286 = vsel %vm278, %v255, 0
  %v289 = vsel %vm278, %v256, 0
  %v292 = vsel %vm278, %v257, 0
  %v295 = vsel %vm278, %v258, 0
  %v298 = vsel %vm278, %v259, 0
  %v301 = vsel %vm278, %v260, 0
  %v304 = vsel %vm278, %v261, 0
  %v307 = vsel %vm278, %v262, 0
  %v310 = vsel %vm278, %v263, 0
  %v313 = vsel %vm278, %v264, 0
  %v316 = vsel %vm278, %v265, 0
  %v319 = vsel %vm278, %v266, 0
  %v322 = vsel %vm278, %v267, 0
  %v325 = vsel %vm278, %v268, 0
  %vm327 = vcmask 1046528
  %v329 = vsel %vm327, %v270, 0
  %331 = vmatprep.subr.mxu0 0.0
  %332 = vmatpush1.msra.mxu0 %v269
  %333 = vmatprep.subr.mxu0 0.0
  %334 = vmatpush1.msra.mxu0 %v329
  %335 = vmatprep.subr.mxu0 0.0
  %336 = vmatpush1.msra.mxu0 0.0
  %337 = vmatprep.subr.mxu0 0.0
  %338 = vmatpush1.msra.mxu0 0.0
  %339 = vmatprep.subr.mxu0 0.0
  %340 = vmatpush1.msra.mxu0 0.0
  %341 = vmatprep.subr.mxu0 0.0
  %342 = vmatpush1.msra.mxu0 0.0
  %343 = vmatprep.subr.mxu0 0.0
  %344 = vmatpush1.msra.mxu0 0.0
  %345 = vmatprep.subr.mxu0 0.0
  %346 = vmatpush1.msra.mxu0 0.0
  %347 = vmatprep.subr.mxu0 0.0
  %348 = vmatpush1.msra.mxu0 0.0
  %349 = vmatprep.subr.mxu0 0.0
  %350 = vmatpush1.msra.mxu0 0.0
  %351 = vmatprep.subr.mxu0 0.0
  %352 = vmatpush1.msra.mxu0 0.0
  %353 = vmatprep.subr.mxu0 0.0
  %354 = vmatpush1.msra.mxu0 0.0
  %355 = vmatprep.subr.mxu0 0.0
  %356 = vmatpush1.msra.mxu0 0.0
  %357 = vmatprep.subr.mxu0 0.0
  %358 = vmatpush1.msra.mxu0 0.0
  %359 = vmatprep.subr.mxu0 0.0
  %360 = vmatpush1.msra.mxu0 0.0
  %361 = vmatprep.subr.mxu0 0.0
  %362 = vmatpush1.msra.mxu0 0.0
  %363 = vmatprep.subr.mxu0 0.0
  %364 = vmatpush1.msra.mxu0 0.0
  %365 = vmatprep.subr.mxu0 0.0
  %366 = vmatpush1.msra.mxu0 0.0
  %367 = vmatprep.subr.mxu0 0.0
  %368 = vmatpush1.msra.mxu0 0.0
  %369 = vmatprep.subr.mxu0 0.0
  %370 = vmatpush1.msra.mxu0 0.0
  %371 = vmatprep.subr.mxu0 0.0
  %372 = vmatpush1.msra.mxu0 0.0
  %373 = vmatprep.subr.mxu0 0.0
  %374 = vmatpush1.msra.mxu0 0.0
  %375 = vmatprep.subr.mxu0 0.0
  %376 = vmatpush1.msra.mxu0 0.0
  %377 = vmatprep.subr.mxu0 0.0
  %378 = vmatpush1.msra.mxu0 0.0
  %379 = vmatprep.subr.mxu0 0.0
  %380 = vmatpush1.msra.mxu0 0.0
  %381 = vmatprep.subr.mxu0 0.0
  %382 = vmatpush1.msra.mxu0 0.0
  %383 = vmatprep.subr.mxu0 0.0
  %384 = vmatpush1.msra.mxu0 0.0
  %385 = vmatprep.subr.mxu0 0.0
  %386 = vmatpush1.msra.mxu0 0.0
  %387 = vmatprep.subr.mxu0 0.0
  %388 = vmatpush1.msra.mxu0 0.0
  %389 = vmatprep.subr.mxu0 0.0
  %390 = vmatpush1.msra.mxu0 0.0
  %391 = vmatprep.subr.mxu0 0.0
  %392 = vmatpush1.msra.mxu0 0.0
  %393 = vmatprep.subr.mxu0 0.0
  %394 = vmatpush1.msra.mxu0 0.0
  %395 = vmatprep.mubr.f32.mxu0 0.0
  %396 = vmatmul.mubr.f32.gmra.mrb[0].mxu0 %v280
  %v397 = vpop.f32.mrb[0].mxu0
  %v398 = vadd.f32 %v276, %v397
  %v399 = vpop.f32.mrb[0].mxu0
  %400 = vmatprep.mubr.f32.mxu0 0.0
  %401 = vmatmul.mubr.f32.gmra.mrb[0].mxu0 %v283
  %v402 = vpop.f32.mrb[0].mxu0
  %v403 = vadd.f32 %v276, %v402
  %v404 = vpop.f32.mrb[0].mxu0
  %405 = vmatprep.mubr.f32.mxu0 0.0
  %406 = vmatmul.mubr.f32.gmra.mrb[0].mxu0 %v286
  %v407 = vpop.f32.mrb[0].mxu0
  %v408 = vadd.f32 %v276, %v407
  %v409 = vpop.f32.mrb[0].mxu0
  %410 = vmatprep.mubr.f32.mxu0 0.0
  %411 = vmatmul.mubr.f32.gmra.mrb[0].mxu0 %v289
  %v412 = vpop.f32.mrb[0].mxu0
  %v413 = vadd.f32 %v276, %v412
  %v414 = vpop.f32.mrb[0].mxu0
  %415 = vmatprep.mubr.f32.mxu0 0.0
  %416 = vmatmul.mubr.f32.gmra.mrb[0].mxu0 %v292
  %v417 = vpop.f32.mrb[0].mxu0
  %v418 = vadd.f32 %v276, %v417
  %v419 = vpop.f32.mrb[0].mxu0
  %420 = vmatprep.mubr.f32.mxu0 0.0
  %421 = vmatmul.mubr.f32.gmra.mrb[0].mxu0 %v295
  %v422 = vpop.f32.mrb[0].mxu0
  %v423 = vadd.f32 %v276, %v422
  %v424 = vpop.f32.mrb[0].mxu0
  %425 = vmatprep.mubr.f32.mxu0 0.0
  %426 = vmatmul.mubr.f32.gmra.mrb[0].mxu0 %v298
  %v427 = vpop.f32.mrb[0].mxu0
  %v428 = vadd.f32 %v276, %v427
  %v429 = vpop.f32.mrb[0].mxu0
  %430 = vmatprep.mubr.f32.mxu0 0.0
  %431 = vmatmul.mubr.f32.gmra.mrb[0].mxu0 %v301
  %v432 = vpop.f32.mrb[0].mxu0
  %v433 = vadd.f32 %v276, %v432
  %v434 = vpop.f32.mrb[0].mxu0
  %435 = vmatprep.mubr.f32.mxu0 0.0
  %436 = vmatmul.mubr.f32.gmra.mrb[0].mxu0 %v304
  %v437 = vpop.f32.mrb[0].mxu0
  %v438 = vadd.f32 %v276, %v437
  %v439 = vpop.f32.mrb[0].mxu0
  %440 = vmatprep.mubr.f32.mxu0 0.0
  %441 = vmatmul.mubr.f32.gmra.mrb[0].mxu0 %v307
  %v442 = vpop.f32.mrb[0].mxu0
  %v443 = vadd.f32 %v276, %v442
  %v444 = vpop.f32.mrb[0].mxu0
  %445 = vmatprep.mubr.f32.mxu0 0.0
  %446 = vmatmul.mubr.f32.gmra.mrb[0].mxu0 %v310
  %v447 = vpop.f32.mrb[0].mxu0
  %v448 = vadd.f32 %v276, %v447
  %v449 = vpop.f32.mrb[0].mxu0
  %450 = vmatprep.mubr.f32.mxu0 0.0
  %451 = vmatmul.mubr.f32.gmra.mrb[0].mxu0 %v313
  %v452 = vpop.f32.mrb[0].mxu0
  %v453 = vadd.f32 %v276, %v452
  %v454 = vpop.f32.mrb[0].mxu0
  %455 = vmatprep.mubr.f32.mxu0 0.0
  %456 = vmatmul.mubr.f32.gmra.mrb[0].mxu0 %v316
  %v457 = vpop.f32.mrb[0].mxu0
  %v458 = vadd.f32 %v276, %v457
  %v459 = vpop.f32.mrb[0].mxu0
  %460 = vmatprep.mubr.f32.mxu0 0.0
  %461 = vmatmul.mubr.f32.gmra.mrb[0].mxu0 %v319
  %v462 = vpop.f32.mrb[0].mxu0
  %v463 = vadd.f32 %v276, %v462
  %v464 = vpop.f32.mrb[0].mxu0
  %465 = vmatprep.mubr.f32.mxu0 0.0
  %466 = vmatmul.mubr.f32.gmra.mrb[0].mxu0 %v322
  %v467 = vpop.f32.mrb[0].mxu0
  %v468 = vadd.f32 %v276, %v467
  %v469 = vpop.f32.mrb[0].mxu0
  %470 = vmatprep.mubr.f32.mxu0 0.0
  %471 = vmatmul.mubr.f32.gmra.mrb[0].mxu0 %v325
  %v472 = vpop.f32.mrb[0].mxu0
  %v473 = vadd.f32 %v276, %v472
  %v474 = vpop.f32.mrb[0].mxu0
  %475 = vdwg.mxu0
  %vm476 = vcmask 162816
  %477 = vst.msk [vmem:[#allocation2] sm:$0xff] %vm476, %v398
  %478 = vst.msk [vmem:[#allocation2 + $0x8] sm:$0xff] %vm476, %v403
  %479 = vst.msk [vmem:[#allocation2 + $0x10] sm:$0xff] %vm476, %v408
  %480 = vst.msk [vmem:[#allocation2 + $0x18] sm:$0xff] %vm476, %v413
  %481 = vst.msk [vmem:[#allocation2 + $0x20] sm:$0xff] %vm476, %v418
  %482 = vst.msk [vmem:[#allocation2 + $0x28] sm:$0xff] %vm476, %v423
  %483 = vst.msk [vmem:[#allocation2 + $0x30] sm:$0xff] %vm476, %v428
  %484 = vst.msk [vmem:[#allocation2 + $0x38] sm:$0xff] %vm476, %v433
  %485 = vst.msk [vmem:[#allocation2 + $0x40] sm:$0xff] %vm476, %v438
  %486 = vst.msk [vmem:[#allocation2 + $0x48] sm:$0xff] %vm476, %v443
  %487 = vst.msk [vmem:[#allocation2 + $0x50] sm:$0xff] %vm476, %v448
  %488 = vst.msk [vmem:[#allocation2 + $0x58] sm:$0xff] %vm476, %v453
  %489 = vst.msk [vmem:[#allocation2 + $0x60] sm:$0xff] %vm476, %v458
  %490 = vst.msk [vmem:[#allocation2 + $0x68] sm:$0xff] %vm476, %v463
  %491 = vst.msk [vmem:[#allocation2 + $0x70] sm:$0xff] %vm476, %v468
  %492 = vst.msk [vmem:[#allocation2 + $0x78] sm:$0xff] %vm476, %v473
  %v493 = vld [vmem:[%s4] sm:$0x1f]
  %v494 = vld [vmem:[#allocation2] sm:$0xff]
  %v495 = vlaneseq
  %v496 = vshrl.u32 %v495, 7
  %v497 = vsub.s32 0, %v496
  %v498 = vrot.slane %v493, %v497
  %v499 = vmul.f32 %v498, 0.0
  %v500 = vadd.f32 %v494, %v499
  %v501 = vlaneseq
  %v502 = vshrl.u32 %v501, 7
  %v503 = vsub.s32 1, %v502
  %v504 = vrot.slane %v493, %v503
  %v505 = vmul.f32 %v504, 0.0
  %v506 = vadd.f32 %v500, %v505
  %v507 = vlaneseq
  %v508 = vshrl.u32 %v507, 7
  %v509 = vsub.s32 2, %v508
  %v510 = vrot.slane %v493, %v509
  %v511 = vmul.f32 %v510, 0.0
  %v512 = vadd.f32 %v506, %v511
  %v513 = vlaneseq
  %v514 = vshrl.u32 %v513, 7
  %v515 = vsub.s32 3, %v514
  %v516 = vrot.slane %v493, %v515
  %v517 = vmul.f32 %v516, 0.0
  %v518 = vadd.f32 %v512, %v517
  %v519 = vlaneseq
  %v520 = vshrl.u32 %v519, 7
  %v521 = vsub.s32 4, %v520
  %v522 = vrot.slane %v493, %v521
  %v523 = vmul.f32 %v522, 0.0
  %v524 = vadd.f32 %v518, %v523
  %v525 = vxor.u32 %v524, 2147483648
  %v526 = vmul.f32 %v525, 1.442695
  %v527 = vpow.pop %v526
  %v528 = vadd.f32 %v527, 1.0
  %v529 = vrcp.pop %v528
  %v530 = vmul.f32 1.0, %v529
  %v531 = vtanh.pop %v524
  %v532 = vmul.f32 %v530, 0.0
  %534 = vrot.lane.b32.xlu0 %v531, 118
  %v535 = vpop.permute.xlu0 %534
  %v537 = vmul.f32 %v530, %v535
  %539 = vrot.lane.b32.xlu0 %v537, 5
  %v540 = vpop.permute.xlu0 %539
  %v542 = vadd.f32 %v532, %v540
  %v543 = vtanh.pop %v542
  %545 = vrot.lane.b32.xlu0 %v543, 10
  %v546 = vpop.permute.xlu0 %545
  %v548 = vmul.f32 %v530, %v546
  %v549 = vld [vmem:[#allocation2 + $0x8] sm:$0xff]
  %551 = vset.pattern.permute.xlu0 15
  %552 = vperm.xlu0 %551, %v548
  %v553 = vpop.permute.xlu0 %552
  %v555 = vmul.f32 %v553, %v498
  %v556 = vadd.f32 %v549, %v555
  %557 = vset.pattern.permute.xlu0 16
  %558 = vperm.xlu0 %557, %v548
  %v559 = vpop.permute.xlu0 %558
  %v561 = vmul.f32 %v559, %v504
  %v562 = vadd.f32 %v556, %v561
  %563 = vset.pattern.permute.xlu0 17
  %564 = vperm.xlu0 %563, %v548
  %v565 = vpop.permute.xlu0 %564
  %v567 = vmul.f32 %v565, %v510
  %v568 = vadd.f32 %v562, %v567
  %569 = vset.pattern.permute.xlu0 18
  %570 = vperm.xlu0 %569, %v548
  %v571 = vpop.permute.xlu0 %570
  %v573 = vmul.f32 %v571, %v516
  %v574 = vadd.f32 %v568, %v573
  %575 = vset.pattern.permute.xlu0 19
  %576 = vperm.xlu0 %575, %v548
  %v577 = vpop.permute.xlu0 %576
  %v579 = vmul.f32 %v577, %v522
  %v580 = vadd.f32 %v574, %v579
  %v581 = vxor.u32 %v580, 2147483648
  %v582 = vmul.f32 %v581, 1.442695
  %v583 = vpow.pop %v582
  %v584 = vadd.f32 %v583, 1.0
  %v585 = vrcp.pop %v584
  %v586 = vmul.f32 1.0, %v585
  %v587 = vtanh.pop %v580
  %v588 = vmul.f32 %v586, %v542
  %590 = vrot.lane.b32.xlu0 %v587, 118
  %v591 = vpop.permute.xlu0 %590
  %v593 = vmul.f32 %v586, %v591
  %595 = vrot.lane.b32.xlu0 %v593, 5
  %v596 = vpop.permute.xlu0 %595
  %v598 = vadd.f32 %v588, %v596
  %v599 = vtanh.pop %v598
  %601 = vrot.lane.b32.xlu0 %v599, 10
  %v602 = vpop.permute.xlu0 %601
  %v604 = vmul.f32 %v586, %v602
  %v605 = vld [vmem:[#allocation2 + $0x10] sm:$0xff]
  %607 = vset.pattern.permute.xlu0 15
  %608 = vperm.xlu0 %607, %v604
  %v609 = vpop.permute.xlu0 %608
  %v611 = vmul.f32 %v609, %v498
  %v612 = vadd.f32 %v605, %v611
  %613 = vset.pattern.permute.xlu0 16
  %614 = vperm.xlu0 %613, %v604
  %v615 = vpop.permute.xlu0 %614
  %v617 = vmul.f32 %v615, %v504
  %v618 = vadd.f32 %v612, %v617
  %619 = vset.pattern.permute.xlu0 17
  %620 = vperm.xlu0 %619, %v604
  %v621 = vpop.permute.xlu0 %620
  %v623 = vmul.f32 %v621, %v510
  %v624 = vadd.f32 %v618, %v623
  %625 = vset.pattern.permute.xlu0 18
  %626 = vperm.xlu0 %625, %v604
  %v627 = vpop.permute.xlu0 %626
  %v629 = vmul.f32 %v627, %v516
  %v630 = vadd.f32 %v624, %v629
  %631 = vset.pattern.permute.xlu0 19
  %632 = vperm.xlu0 %631, %v604
  %v633 = vpop.permute.xlu0 %632
  %v635 = vmul.f32 %v633, %v522
  %v636 = vadd.f32 %v630, %v635
  %v637 = vxor.u32 %v636, 2147483648
  %v638 = vmul.f32 %v637, 1.442695
  %v639 = vpow.pop %v638
  %v640 = vadd.f32 %v639, 1.0
  %v641 = vrcp.pop %v640
  %v642 = vmul.f32 1.0, %v641
  %v643 = vtanh.pop %v636
  %v644 = vmul.f32 %v642, %v598
  %646 = vrot.lane.b32.xlu0 %v643, 118
  %v647 = vpop.permute.xlu0 %646
  %v649 = vmul.f32 %v642, %v647
  %651 = vrot.lane.b32.xlu0 %v649, 5
  %v652 = vpop.permute.xlu0 %651
  %v654 = vadd.f32 %v644, %v652
  %v655 = vtanh.pop %v654
  %657 = vrot.lane.b32.xlu0 %v655, 10
  %v658 = vpop.permute.xlu0 %657
  %v660 = vmul.f32 %v642, %v658
  %v661 = vld [vmem:[#allocation2 + $0x18] sm:$0xff]
  %663 = vset.pattern.permute.xlu0 15
  %664 = vperm.xlu0 %663, %v660
  %v665 = vpop.permute.xlu0 %664
  %v667 = vmul.f32 %v665, %v498
  %v668 = vadd.f32 %v661, %v667
  %669 = vset.pattern.permute.xlu0 16
  %670 = vperm.xlu0 %669, %v660
  %v671 = vpop.permute.xlu0 %670
  %v673 = vmul.f32 %v671, %v504
  %v674 = vadd.f32 %v668, %v673
  %675 = vset.pattern.permute.xlu0 17
  %676 = vperm.xlu0 %675, %v660
  %v677 = vpop.permute.xlu0 %676
  %v679 = vmul.f32 %v677, %v510
  %v680 = vadd.f32 %v674, %v679
  %681 = vset.pattern.permute.xlu0 18
  %682 = vperm.xlu0 %681, %v660
  %v683 = vpop.permute.xlu0 %682
  %v685 = vmul.f32 %v683, %v516
  %v686 = vadd.f32 %v680, %v685
  %687 = vset.pattern.permute.xlu0 19
  %688 = vperm.xlu0 %687, %v660
  %v689 = vpop.permute.xlu0 %688
  %v691 = vmul.f32 %v689, %v522
  %v692 = vadd.f32 %v686, %v691
  %v693 = vxor.u32 %v692, 2147483648
  %v694 = vmul.f32 %v693, 1.442695
  %v695 = vpow.pop %v694
  %v696 = vadd.f32 %v695, 1.0
  %v697 = vrcp.pop %v696
  %v698 = vmul.f32 1.0, %v697
  %v699 = vtanh.pop %v692
  %v700 = vmul.f32 %v698, %v654
  %702 = vrot.lane.b32.xlu0 %v699, 118
  %v703 = vpop.permute.xlu0 %702
  %v705 = vmul.f32 %v698, %v703
  %707 = vrot.lane.b32.xlu0 %v705, 5
  %v708 = vpop.permute.xlu0 %707
  %v710 = vadd.f32 %v700, %v708
  %v711 = vtanh.pop %v710
  %713 = vrot.lane.b32.xlu0 %v711, 10
  %v714 = vpop.permute.xlu0 %713
  %v716 = vmul.f32 %v698, %v714
  %v717 = vld [vmem:[#allocation2 + $0x20] sm:$0xff]
  %719 = vset.pattern.permute.xlu0 15
  %720 = vperm.xlu0 %719, %v716
  %v721 = vpop.permute.xlu0 %720
  %v723 = vmul.f32 %v721, %v498
  %v724 = vadd.f32 %v717, %v723
  %725 = vset.pattern.permute.xlu0 16
  %726 = vperm.xlu0 %725, %v716
  %v727 = vpop.permute.xlu0 %726
  %v729 = vmul.f32 %v727, %v504
  %v730 = vadd.f32 %v724, %v729
  %731 = vset.pattern.permute.xlu0 17
  %732 = vperm.xlu0 %731, %v716
  %v733 = vpop.permute.xlu0 %732
  %v735 = vmul.f32 %v733, %v510
  %v736 = vadd.f32 %v730, %v735
  %737 = vset.pattern.permute.xlu0 18
  %738 = vperm.xlu0 %737, %v716
  %v739 = vpop.permute.xlu0 %738
  %v741 = vmul.f32 %v739, %v516
  %v742 = vadd.f32 %v736, %v741
  %743 = vset.pattern.permute.xlu0 19
  %744 = vperm.xlu0 %743, %v716
  %v745 = vpop.permute.xlu0 %744
  %v747 = vmul.f32 %v745, %v522
  %v748 = vadd.f32 %v742, %v747
  %v749 = vxor.u32 %v748, 2147483648
  %v750 = vmul.f32 %v749, 1.442695
  %v751 = vpow.pop %v750
  %v752 = vadd.f32 %v751, 1.0
  %v753 = vrcp.pop %v752
  %v754 = vmul.f32 1.0, %v753
  %v755 = vtanh.pop %v748
  %v756 = vmul.f32 %v754, %v710
  %758 = vrot.lane.b32.xlu0 %v755, 118
  %v759 = vpop.permute.xlu0 %758
  %v761 = vmul.f32 %v754, %v759
  %763 = vrot.lane.b32.xlu0 %v761, 5
  %v764 = vpop.permute.xlu0 %763
  %v766 = vadd.f32 %v756, %v764
  %v767 = vtanh.pop %v766
  %769 = vrot.lane.b32.xlu0 %v767, 10
  %v770 = vpop.permute.xlu0 %769
  %v772 = vmul.f32 %v754, %v770
  %v773 = vld [vmem:[#allocation2 + $0x28] sm:$0xff]
  %775 = vset.pattern.permute.xlu0 15
  %776 = vperm.xlu0 %775, %v772
  %v777 = vpop.permute.xlu0 %776
  %v779 = vmul.f32 %v777, %v498
  %v780 = vadd.f32 %v773, %v779
  %781 = vset.pattern.permute.xlu0 16
  %782 = vperm.xlu0 %781, %v772
  %v783 = vpop.permute.xlu0 %782
  %v785 = vmul.f32 %v783, %v504
  %v786 = vadd.f32 %v780, %v785
  %787 = vset.pattern.permute.xlu0 17
  %788 = vperm.xlu0 %787, %v772
  %v789 = vpop.permute.xlu0 %788
  %v791 = vmul.f32 %v789, %v510
  %v792 = vadd.f32 %v786, %v791
  %793 = vset.pattern.permute.xlu0 18
  %794 = vperm.xlu0 %793, %v772
  %v795 = vpop.permute.xlu0 %794
  %v797 = vmul.f32 %v795, %v516
  %v798 = vadd.f32 %v792, %v797
  %799 = vset.pattern.permute.xlu0 19
  %800 = vperm.xlu0 %799, %v772
  %v801 = vpop.permute.xlu0 %800
  %v803 = vmul.f32 %v801, %v522
  %v804 = vadd.f32 %v798, %v803
  %v805 = vxor.u32 %v804, 2147483648
  %v806 = vmul.f32 %v805, 1.442695
  %v807 = vpow.pop %v806
  %v808 = vadd.f32 %v807, 1.0
  %v809 = vrcp.pop %v808
  %v810 = vmul.f32 1.0, %v809
  %v811 = vtanh.pop %v804
  %v812 = vmul.f32 %v810, %v766
  %814 = vrot.lane.b32.xlu0 %v811, 118
  %v815 = vpop.permute.xlu0 %814
  %v817 = vmul.f32 %v810, %v815
  %819 = vrot.lane.b32.xlu0 %v817, 5
  %v820 = vpop.permute.xlu0 %819
  %v822 = vadd.f32 %v812, %v820
  %v823 = vtanh.pop %v822
  %825 = vrot.lane.b32.xlu0 %v823, 10
  %v826 = vpop.permute.xlu0 %825
  %v828 = vmul.f32 %v810, %v826
  %v829 = vld [vmem:[#allocation2 + $0x30] sm:$0xff]
  %831 = vset.pattern.permute.xlu0 15
  %832 = vperm.xlu0 %831, %v828
  %v833 = vpop.permute.xlu0 %832
  %v835 = vmul.f32 %v833, %v498
  %v836 = vadd.f32 %v829, %v835
  %837 = vset.pattern.permute.xlu0 16
  %838 = vperm.xlu0 %837, %v828
  %v839 = vpop.permute.xlu0 %838
  %v841 = vmul.f32 %v839, %v504
  %v842 = vadd.f32 %v836, %v841
  %843 = vset.pattern.permute.xlu0 17
  %844 = vperm.xlu0 %843, %v828
  %v845 = vpop.permute.xlu0 %844
  %v847 = vmul.f32 %v845, %v510
  %v848 = vadd.f32 %v842, %v847
  %849 = vset.pattern.permute.xlu0 18
  %850 = vperm.xlu0 %849, %v828
  %v851 = vpop.permute.xlu0 %850
  %v853 = vmul.f32 %v851, %v516
  %v854 = vadd.f32 %v848, %v853
  %855 = vset.pattern.permute.xlu0 19
  %856 = vperm.xlu0 %855, %v828
  %v857 = vpop.permute.xlu0 %856
  %v859 = vmul.f32 %v857, %v522
  %v860 = vadd.f32 %v854, %v859
  %v861 = vxor.u32 %v860, 2147483648
  %v862 = vmul.f32 %v861, 1.442695
  %v863 = vpow.pop %v862
  %v864 = vadd.f32 %v863, 1.0
  %v865 = vrcp.pop %v864
  %v866 = vmul.f32 1.0, %v865
  %v867 = vtanh.pop %v860
  %v868 = vmul.f32 %v866, %v822
  %870 = vrot.lane.b32.xlu0 %v867, 118
  %v871 = vpop.permute.xlu0 %870
  %v873 = vmul.f32 %v866, %v871
  %875 = vrot.lane.b32.xlu0 %v873, 5
  %v876 = vpop.permute.xlu0 %875
  %v878 = vadd.f32 %v868, %v876
  %v879 = vtanh.pop %v878
  %881 = vrot.lane.b32.xlu0 %v879, 10
  %v882 = vpop.permute.xlu0 %881
  %v884 = vmul.f32 %v866, %v882
  %v885 = vld [vmem:[#allocation2 + $0x38] sm:$0xff]
  %887 = vset.pattern.permute.xlu0 15
  %888 = vperm.xlu0 %887, %v884
  %v889 = vpop.permute.xlu0 %888
  %v891 = vmul.f32 %v889, %v498
  %v892 = vadd.f32 %v885, %v891
  %893 = vset.pattern.permute.xlu0 16
  %894 = vperm.xlu0 %893, %v884
  %v895 = vpop.permute.xlu0 %894
  %v897 = vmul.f32 %v895, %v504
  %v898 = vadd.f32 %v892, %v897
  %899 = vset.pattern.permute.xlu0 17
  %900 = vperm.xlu0 %899, %v884
  %v901 = vpop.permute.xlu0 %900
  %v903 = vmul.f32 %v901, %v510
  %v904 = vadd.f32 %v898, %v903
  %905 = vset.pattern.permute.xlu0 18
  %906 = vperm.xlu0 %905, %v884
  %v907 = vpop.permute.xlu0 %906
  %v909 = vmul.f32 %v907, %v516
  %v910 = vadd.f32 %v904, %v909
  %911 = vset.pattern.permute.xlu0 19
  %912 = vperm.xlu0 %911, %v884
  %v913 = vpop.permute.xlu0 %912
  %v915 = vmul.f32 %v913, %v522
  %v916 = vadd.f32 %v910, %v915
  %v917 = vxor.u32 %v916, 2147483648
  %v918 = vmul.f32 %v917, 1.442695
  %v919 = vpow.pop %v918
  %v920 = vadd.f32 %v919, 1.0
  %v921 = vrcp.pop %v920
  %v922 = vmul.f32 1.0, %v921
  %v923 = vtanh.pop %v916
  %v924 = vmul.f32 %v922, %v878
  %926 = vrot.lane.b32.xlu0 %v923, 118
  %v927 = vpop.permute.xlu0 %926
  %v929 = vmul.f32 %v922, %v927
  %931 = vrot.lane.b32.xlu0 %v929, 5
  %v932 = vpop.permute.xlu0 %931
  %v934 = vadd.f32 %v924, %v932
  %v935 = vtanh.pop %v934
  %937 = vrot.lane.b32.xlu0 %v935, 10
  %v938 = vpop.permute.xlu0 %937
  %v940 = vmul.f32 %v922, %v938
  %v941 = vld [vmem:[#allocation2 + $0x40] sm:$0xff]
  %943 = vset.pattern.permute.xlu0 15
  %944 = vperm.xlu0 %943, %v940
  %v945 = vpop.permute.xlu0 %944
  %v947 = vmul.f32 %v945, %v498
  %v948 = vadd.f32 %v941, %v947
  %949 = vset.pattern.permute.xlu0 16
  %950 = vperm.xlu0 %949, %v940
  %v951 = vpop.permute.xlu0 %950
  %v953 = vmul.f32 %v951, %v504
  %v954 = vadd.f32 %v948, %v953
  %955 = vset.pattern.permute.xlu0 17
  %956 = vperm.xlu0 %955, %v940
  %v957 = vpop.permute.xlu0 %956
  %v959 = vmul.f32 %v957, %v510
  %v960 = vadd.f32 %v954, %v959
  %961 = vset.pattern.permute.xlu0 18
  %962 = vperm.xlu0 %961, %v940
  %v963 = vpop.permute.xlu0 %962
  %v965 = vmul.f32 %v963, %v516
  %v966 = vadd.f32 %v960, %v965
  %967 = vset.pattern.permute.xlu0 19
  %968 = vperm.xlu0 %967, %v940
  %v969 = vpop.permute.xlu0 %968
  %v971 = vmul.f32 %v969, %v522
  %v972 = vadd.f32 %v966, %v971
  %v973 = vxor.u32 %v972, 2147483648
  %v974 = vmul.f32 %v973, 1.442695
  %v975 = vpow.pop %v974
  %v976 = vadd.f32 %v975, 1.0
  %v977 = vrcp.pop %v976
  %v978 = vmul.f32 1.0, %v977
  %v979 = vtanh.pop %v972
  %v980 = vmul.f32 %v978, %v934
  %982 = vrot.lane.b32.xlu0 %v979, 118
  %v983 = vpop.permute.xlu0 %982
  %v985 = vmul.f32 %v978, %v983
  %987 = vrot.lane.b32.xlu0 %v985, 5
  %v988 = vpop.permute.xlu0 %987
  %v990 = vadd.f32 %v980, %v988
  %v991 = vtanh.pop %v990
  %993 = vrot.lane.b32.xlu0 %v991, 10
  %v994 = vpop.permute.xlu0 %993
  %v996 = vmul.f32 %v978, %v994
  %v997 = vld [vmem:[#allocation2 + $0x48] sm:$0xff]
  %999 = vset.pattern.permute.xlu0 15
  %1000 = vperm.xlu0 %999, %v996
  %v1001 = vpop.permute.xlu0 %1000
  %v1003 = vmul.f32 %v1001, %v498
  %v1004 = vadd.f32 %v997, %v1003
  %1005 = vset.pattern.permute.xlu0 16
  %1006 = vperm.xlu0 %1005, %v996
  %v1007 = vpop.permute.xlu0 %1006
  %v1009 = vmul.f32 %v1007, %v504
  %v1010 = vadd.f32 %v1004, %v1009
  %1011 = vset.pattern.permute.xlu0 17
  %1012 = vperm.xlu0 %1011, %v996
  %v1013 = vpop.permute.xlu0 %1012
  %v1015 = vmul.f32 %v1013, %v510
  %v1016 = vadd.f32 %v1010, %v1015
  %1017 = vset.pattern.permute.xlu0 18
  %1018 = vperm.xlu0 %1017, %v996
  %v1019 = vpop.permute.xlu0 %1018
  %v1021 = vmul.f32 %v1019, %v516
  %v1022 = vadd.f32 %v1016, %v1021
  %1023 = vset.pattern.permute.xlu0 19
  %1024 = vperm.xlu0 %1023, %v996
  %v1025 = vpop.permute.xlu0 %1024
  %v1027 = vmul.f32 %v1025, %v522
  %v1028 = vadd.f32 %v1022, %v1027
  %v1029 = vxor.u32 %v1028, 2147483648
  %v1030 = vmul.f32 %v1029, 1.442695
  %v1031 = vpow.pop %v1030
  %v1032 = vadd.f32 %v1031, 1.0
  %v1033 = vrcp.pop %v1032
  %v1034 = vmul.f32 1.0, %v1033
  %v1035 = vtanh.pop %v1028
  %v1036 = vmul.f32 %v1034, %v990
  %1038 = vrot.lane.b32.xlu0 %v1035, 118
  %v1039 = vpop.permute.xlu0 %1038
  %v1041 = vmul.f32 %v1034, %v1039
  %1043 = vrot.lane.b32.xlu0 %v1041, 5
  %v1044 = vpop.permute.xlu0 %1043
  %v1046 = vadd.f32 %v1036, %v1044
  %v1047 = vtanh.pop %v1046
  %1049 = vrot.lane.b32.xlu0 %v1047, 10
  %v1050 = vpop.permute.xlu0 %1049
  %v1052 = vmul.f32 %v1034, %v1050
  %v1053 = vld [vmem:[#allocation2 + $0x50] sm:$0xff]
  %1055 = vset.pattern.permute.xlu0 15
  %1056 = vperm.xlu0 %1055, %v1052
  %v1057 = vpop.permute.xlu0 %1056
  %v1059 = vmul.f32 %v1057, %v498
  %v1060 = vadd.f32 %v1053, %v1059
  %1061 = vset.pattern.permute.xlu0 16
  %1062 = vperm.xlu0 %1061, %v1052
  %v1063 = vpop.permute.xlu0 %1062
  %v1065 = vmul.f32 %v1063, %v504
  %v1066 = vadd.f32 %v1060, %v1065
  %1067 = vset.pattern.permute.xlu0 17
  %1068 = vperm.xlu0 %1067, %v1052
  %v1069 = vpop.permute.xlu0 %1068
  %v1071 = vmul.f32 %v1069, %v510
  %v1072 = vadd.f32 %v1066, %v1071
  %1073 = vset.pattern.permute.xlu0 18
  %1074 = vperm.xlu0 %1073, %v1052
  %v1075 = vpop.permute.xlu0 %1074
  %v1077 = vmul.f32 %v1075, %v516
  %v1078 = vadd.f32 %v1072, %v1077
  %1079 = vset.pattern.permute.xlu0 19
  %1080 = vperm.xlu0 %1079, %v1052
  %v1081 = vpop.permute.xlu0 %1080
  %v1083 = vmul.f32 %v1081, %v522
  %v1084 = vadd.f32 %v1078, %v1083
  %v1085 = vxor.u32 %v1084, 2147483648
  %v1086 = vmul.f32 %v1085, 1.442695
  %v1087 = vpow.pop %v1086
  %v1088 = vadd.f32 %v1087, 1.0
  %v1089 = vrcp.pop %v1088
  %v1090 = vmul.f32 1.0, %v1089
  %v1091 = vtanh.pop %v1084
  %v1092 = vmul.f32 %v1090, %v1046
  %1094 = vrot.lane.b32.xlu0 %v1091, 118
  %v1095 = vpop.permute.xlu0 %1094
  %v1097 = vmul.f32 %v1090, %v1095
  %1099 = vrot.lane.b32.xlu0 %v1097, 5
  %v1100 = vpop.permute.xlu0 %1099
  %v1102 = vadd.f32 %v1092, %v1100
  %v1103 = vtanh.pop %v1102
  %1105 = vrot.lane.b32.xlu0 %v1103, 10
  %v1106 = vpop.permute.xlu0 %1105
  %v1108 = vmul.f32 %v1090, %v1106
  %v1109 = vld [vmem:[#allocation2 + $0x58] sm:$0xff]
  %1111 = vset.pattern.permute.xlu0 15
  %1112 = vperm.xlu0 %1111, %v1108
  %v1113 = vpop.permute.xlu0 %1112
  %v1115 = vmul.f32 %v1113, %v498
  %v1116 = vadd.f32 %v1109, %v1115
  %1117 = vset.pattern.permute.xlu0 16
  %1118 = vperm.xlu0 %1117, %v1108
  %v1119 = vpop.permute.xlu0 %1118
  %v1121 = vmul.f32 %v1119, %v504
  %v1122 = vadd.f32 %v1116, %v1121
  %1123 = vset.pattern.permute.xlu0 17
  %1124 = vperm.xlu0 %1123, %v1108
  %v1125 = vpop.permute.xlu0 %1124
  %v1127 = vmul.f32 %v1125, %v510
  %v1128 = vadd.f32 %v1122, %v1127
  %1129 = vset.pattern.permute.xlu0 18
  %1130 = vperm.xlu0 %1129, %v1108
  %v1131 = vpop.permute.xlu0 %1130
  %v1133 = vmul.f32 %v1131, %v516
  %v1134 = vadd.f32 %v1128, %v1133
  %1135 = vset.pattern.permute.xlu0 19
  %1136 = vperm.xlu0 %1135, %v1108
  %v1137 = vpop.permute.xlu0 %1136
  %v1139 = vmul.f32 %v1137, %v522
  %v1140 = vadd.f32 %v1134, %v1139
  %v1141 = vxor.u32 %v1140, 2147483648
  %v1142 = vmul.f32 %v1141, 1.442695
  %v1143 = vpow.pop %v1142
  %v1144 = vadd.f32 %v1143, 1.0
  %v1145 = vrcp.pop %v1144
  %v1146 = vmul.f32 1.0, %v1145
  %v1147 = vtanh.pop %v1140
  %v1148 = vmul.f32 %v1146, %v1102
  %1150 = vrot.lane.b32.xlu0 %v1147, 118
  %v1151 = vpop.permute.xlu0 %1150
  %v1153 = vmul.f32 %v1146, %v1151
  %1155 = vrot.lane.b32.xlu0 %v1153, 5
  %v1156 = vpop.permute.xlu0 %1155
  %v1158 = vadd.f32 %v1148, %v1156
  %v1159 = vtanh.pop %v1158
  %1161 = vrot.lane.b32.xlu0 %v1159, 10
  %v1162 = vpop.permute.xlu0 %1161
  %v1164 = vmul.f32 %v1146, %v1162
  %v1165 = vld [vmem:[#allocation2 + $0x60] sm:$0xff]
  %1167 = vset.pattern.permute.xlu0 15
  %1168 = vperm.xlu0 %1167, %v1164
  %v1169 = vpop.permute.xlu0 %1168
  %v1171 = vmul.f32 %v1169, %v498
  %v1172 = vadd.f32 %v1165, %v1171
  %1173 = vset.pattern.permute.xlu0 16
  %1174 = vperm.xlu0 %1173, %v1164
  %v1175 = vpop.permute.xlu0 %1174
  %v1177 = vmul.f32 %v1175, %v504
  %v1178 = vadd.f32 %v1172, %v1177
  %1179 = vset.pattern.permute.xlu0 17
  %1180 = vperm.xlu0 %1179, %v1164
  %v1181 = vpop.permute.xlu0 %1180
  %v1183 = vmul.f32 %v1181, %v510
  %v1184 = vadd.f32 %v1178, %v1183
  %1185 = vset.pattern.permute.xlu0 18
  %1186 = vperm.xlu0 %1185, %v1164
  %v1187 = vpop.permute.xlu0 %1186
  %v1189 = vmul.f32 %v1187, %v516
  %v1190 = vadd.f32 %v1184, %v1189
  %1191 = vset.pattern.permute.xlu0 19
  %1192 = vperm.xlu0 %1191, %v1164
  %v1193 = vpop.permute.xlu0 %1192
  %v1195 = vmul.f32 %v1193, %v522
  %v1196 = vadd.f32 %v1190, %v1195
  %v1197 = vxor.u32 %v1196, 2147483648
  %v1198 = vmul.f32 %v1197, 1.442695
  %v1199 = vpow.pop %v1198
  %v1200 = vadd.f32 %v1199, 1.0
  %v1201 = vrcp.pop %v1200
  %v1202 = vmul.f32 1.0, %v1201
  %v1203 = vtanh.pop %v1196
  %v1204 = vmul.f32 %v1202, %v1158
  %1206 = vrot.lane.b32.xlu0 %v1203, 118
  %v1207 = vpop.permute.xlu0 %1206
  %v1209 = vmul.f32 %v1202, %v1207
  %1211 = vrot.lane.b32.xlu0 %v1209, 5
  %v1212 = vpop.permute.xlu0 %1211
  %v1214 = vadd.f32 %v1204, %v1212
  %v1215 = vtanh.pop %v1214
  %1217 = vrot.lane.b32.xlu0 %v1215, 10
  %v1218 = vpop.permute.xlu0 %1217
  %v1220 = vmul.f32 %v1202, %v1218
  %v1221 = vld [vmem:[#allocation2 + $0x68] sm:$0xff]
  %1223 = vset.pattern.permute.xlu0 15
  %1224 = vperm.xlu0 %1223, %v1220
  %v1225 = vpop.permute.xlu0 %1224
  %v1227 = vmul.f32 %v1225, %v498
  %v1228 = vadd.f32 %v1221, %v1227
  %1229 = vset.pattern.permute.xlu0 16
  %1230 = vperm.xlu0 %1229, %v1220
  %v1231 = vpop.permute.xlu0 %1230
  %v1233 = vmul.f32 %v1231, %v504
  %v1234 = vadd.f32 %v1228, %v1233
  %1235 = vset.pattern.permute.xlu0 17
  %1236 = vperm.xlu0 %1235, %v1220
  %v1237 = vpop.permute.xlu0 %1236
  %v1239 = vmul.f32 %v1237, %v510
  %v1240 = vadd.f32 %v1234, %v1239
  %1241 = vset.pattern.permute.xlu0 18
  %1242 = vperm.xlu0 %1241, %v1220
  %v1243 = vpop.permute.xlu0 %1242
  %v1245 = vmul.f32 %v1243, %v516
  %v1246 = vadd.f32 %v1240, %v1245
  %1247 = vset.pattern.permute.xlu0 19
  %1248 = vperm.xlu0 %1247, %v1220
  %v1249 = vpop.permute.xlu0 %1248
  %v1251 = vmul.f32 %v1249, %v522
  %v1252 = vadd.f32 %v1246, %v1251
  %v1253 = vxor.u32 %v1252, 2147483648
  %v1254 = vmul.f32 %v1253, 1.442695
  %v1255 = vpow.pop %v1254
  %v1256 = vadd.f32 %v1255, 1.0
  %v1257 = vrcp.pop %v1256
  %v1258 = vmul.f32 1.0, %v1257
  %v1259 = vtanh.pop %v1252
  %v1260 = vmul.f32 %v1258, %v1214
  %1262 = vrot.lane.b32.xlu0 %v1259, 118
  %v1263 = vpop.permute.xlu0 %1262
  %v1265 = vmul.f32 %v1258, %v1263
  %1267 = vrot.lane.b32.xlu0 %v1265, 5
  %v1268 = vpop.permute.xlu0 %1267
  %v1270 = vadd.f32 %v1260, %v1268
  %v1271 = vtanh.pop %v1270
  %1273 = vrot.lane.b32.xlu0 %v1271, 10
  %v1274 = vpop.permute.xlu0 %1273
  %v1276 = vmul.f32 %v1258, %v1274
  %v1277 = vld [vmem:[#allocation2 + $0x70] sm:$0xff]
  %1279 = vset.pattern.permute.xlu0 15
  %1280 = vperm.xlu0 %1279, %v1276
  %v1281 = vpop.permute.xlu0 %1280
  %v1283 = vmul.f32 %v1281, %v498
  %v1284 = vadd.f32 %v1277, %v1283
  %1285 = vset.pattern.permute.xlu0 16
  %1286 = vperm.xlu0 %1285, %v1276
  %v1287 = vpop.permute.xlu0 %1286
  %v1289 = vmul.f32 %v1287, %v504
  %v1290 = vadd.f32 %v1284, %v1289
  %1291 = vset.pattern.permute.xlu0 17
  %1292 = vperm.xlu0 %1291, %v1276
  %v1293 = vpop.permute.xlu0 %1292
  %v1295 = vmul.f32 %v1293, %v510
  %v1296 = vadd.f32 %v1290, %v1295
  %1297 = vset.pattern.permute.xlu0 18
  %1298 = vperm.xlu0 %1297, %v1276
  %v1299 = vpop.permute.xlu0 %1298
  %v1301 = vmul.f32 %v1299, %v516
  %v1302 = vadd.f32 %v1296, %v1301
  %1303 = vset.pattern.permute.xlu0 19
  %1304 = vperm.xlu0 %1303, %v1276
  %v1305 = vpop.permute.xlu0 %1304
  %v1307 = vmul.f32 %v1305, %v522
  %v1308 = vadd.f32 %v1302, %v1307
  %v1309 = vxor.u32 %v1308, 2147483648
  %v1310 = vmul.f32 %v1309, 1.442695
  %v1311 = vpow.pop %v1310
  %v1312 = vadd.f32 %v1311, 1.0
  %v1313 = vrcp.pop %v1312
  %v1314 = vmul.f32 1.0, %v1313
  %v1315 = vtanh.pop %v1308
  %v1316 = vmul.f32 %v1314, %v1270
  %1318 = vrot.lane.b32.xlu0 %v1315, 118
  %v1319 = vpop.permute.xlu0 %1318
  %v1321 = vmul.f32 %v1314, %v1319
  %1323 = vrot.lane.b32.xlu0 %v1321, 5
  %v1324 = vpop.permute.xlu0 %1323
  %v1326 = vadd.f32 %v1316, %v1324
  %v1327 = vtanh.pop %v1326
  %1329 = vrot.lane.b32.xlu0 %v1327, 10
  %v1330 = vpop.permute.xlu0 %1329
  %v1332 = vmul.f32 %v1314, %v1330
  %v1333 = vld [vmem:[#allocation2 + $0x78] sm:$0xff]
  %1335 = vset.pattern.permute.xlu0 15
  %1336 = vperm.xlu0 %1335, %v1332
  %v1337 = vpop.permute.xlu0 %1336
  %v1339 = vmul.f32 %v1337, %v498
  %v1340 = vadd.f32 %v1333, %v1339
  %1341 = vset.pattern.permute.xlu0 16
  %1342 = vperm.xlu0 %1341, %v1332
  %v1343 = vpop.permute.xlu0 %1342
  %v1345 = vmul.f32 %v1343, %v504
  %v1346 = vadd.f32 %v1340, %v1345
  %1347 = vset.pattern.permute.xlu0 17
  %1348 = vperm.xlu0 %1347, %v1332
  %v1349 = vpop.permute.xlu0 %1348
  %v1351 = vmul.f32 %v1349, %v510
  %v1352 = vadd.f32 %v1346, %v1351
  %1353 = vset.pattern.permute.xlu0 18
  %1354 = vperm.xlu0 %1353, %v1332
  %v1355 = vpop.permute.xlu0 %1354
  %v1357 = vmul.f32 %v1355, %v516
  %v1358 = vadd.f32 %v1352, %v1357
  %1359 = vset.pattern.permute.xlu0 19
  %1360 = vperm.xlu0 %1359, %v1332
  %v1361 = vpop.permute.xlu0 %1360
  %v1363 = vmul.f32 %v1361, %v522
  %v1364 = vadd.f32 %v1358, %v1363
  %v1365 = vxor.u32 %v1364, 2147483648
  %v1366 = vmul.f32 %v1365, 1.442695
  %v1367 = vpow.pop %v1366
  %v1368 = vadd.f32 %v1367, 1.0
  %v1369 = vrcp.pop %v1368
  %v1370 = vmul.f32 1.0, %v1369
  %v1371 = vtanh.pop %v1364
  %v1372 = vmul.f32 %v1370, %v1326
  %1374 = vrot.lane.b32.xlu0 %v1371, 118
  %v1375 = vpop.permute.xlu0 %1374
  %v1377 = vmul.f32 %v1370, %v1375
  %1379 = vrot.lane.b32.xlu0 %v1377, 5
  %v1380 = vpop.permute.xlu0 %1379
  %v1382 = vadd.f32 %v1372, %v1380
  %v1383 = vtanh.pop %v1382
  %1385 = vrot.lane.b32.xlu0 %v1383, 10
  %v1386 = vpop.permute.xlu0 %1385
  %v1388 = vmul.f32 %v1370, %v1386
  %v1389 = vld [vmem:[%s6] sm:$0x1f]
  %v1390 = vld [vmem:[#allocation3] sm:$0x1]
  %v1392 = vlaneseq
  %v1393 = vshrl.u32 %v1392, 7
  %v1394 = vsub.s32 0, %v1393
  %v1395 = vrot.slane %v1390, %v1394
  %1398 = vrot.lane.b32.xlu0 %v1388, 113
  %v1399 = vpop.permute.xlu0 %1398
  %vm1400 = vcmask 39936
  %v1401 = vsel %vm1400, %v1399, 0
  %vm1403 = vcmask 1044480
  %v1405 = vsel %vm1403, %v1389, 0
  %1407 = vmatprep.subr.mxu0 0.0
  %1408 = vmatpush1.msra.mxu0 %v1405
  %1409 = vmatprep.subr.mxu0 0.0
  %1410 = vmatpush1.msra.mxu0 0.0
  %1411 = vmatprep.subr.mxu0 0.0
  %1412 = vmatpush1.msra.mxu0 0.0
  %1413 = vmatprep.subr.mxu0 0.0
  %1414 = vmatpush1.msra.mxu0 0.0
  %1415 = vmatprep.subr.mxu0 0.0
  %1416 = vmatpush1.msra.mxu0 0.0
  %1417 = vmatprep.subr.mxu0 0.0
  %1418 = vmatpush1.msra.mxu0 0.0
  %1419 = vmatprep.subr.mxu0 0.0
  %1420 = vmatpush1.msra.mxu0 0.0
  %1421 = vmatprep.subr.mxu0 0.0
  %1422 = vmatpush1.msra.mxu0 0.0
  %1423 = vmatprep.subr.mxu0 0.0
  %1424 = vmatpush1.msra.mxu0 0.0
  %1425 = vmatprep.subr.mxu0 0.0
  %1426 = vmatpush1.msra.mxu0 0.0
  %1427 = vmatprep.subr.mxu0 0.0
  %1428 = vmatpush1.msra.mxu0 0.0
  %1429 = vmatprep.subr.mxu0 0.0
  %1430 = vmatpush1.msra.mxu0 0.0
  %1431 = vmatprep.subr.mxu0 0.0
  %1432 = vmatpush1.msra.mxu0 0.0
  %1433 = vmatprep.subr.mxu0 0.0
  %1434 = vmatpush1.msra.mxu0 0.0
  %1435 = vmatprep.subr.mxu0 0.0
  %1436 = vmatpush1.msra.mxu0 0.0
  %1437 = vmatprep.subr.mxu0 0.0
  %1438 = vmatpush1.msra.mxu0 0.0
  %1439 = vmatprep.subr.mxu0 0.0
  %1440 = vmatpush1.msra.mxu0 0.0
  %1441 = vmatprep.subr.mxu0 0.0
  %1442 = vmatpush1.msra.mxu0 0.0
  %1443 = vmatprep.subr.mxu0 0.0
  %1444 = vmatpush1.msra.mxu0 0.0
  %1445 = vmatprep.subr.mxu0 0.0
  %1446 = vmatpush1.msra.mxu0 0.0
  %1447 = vmatprep.subr.mxu0 0.0
  %1448 = vmatpush1.msra.mxu0 0.0
  %1449 = vmatprep.subr.mxu0 0.0
  %1450 = vmatpush1.msra.mxu0 0.0
  %1451 = vmatprep.subr.mxu0 0.0
  %1452 = vmatpush1.msra.mxu0 0.0
  %1453 = vmatprep.subr.mxu0 0.0
  %1454 = vmatpush1.msra.mxu0 0.0
  %1455 = vmatprep.subr.mxu0 0.0
  %1456 = vmatpush1.msra.mxu0 0.0
  %1457 = vmatprep.subr.mxu0 0.0
  %1458 = vmatpush1.msra.mxu0 0.0
  %1459 = vmatprep.subr.mxu0 0.0
  %1460 = vmatpush1.msra.mxu0 0.0
  %1461 = vmatprep.subr.mxu0 0.0
  %1462 = vmatpush1.msra.mxu0 0.0
  %1463 = vmatprep.subr.mxu0 0.0
  %1464 = vmatpush1.msra.mxu0 0.0
  %1465 = vmatprep.subr.mxu0 0.0
  %1466 = vmatpush1.msra.mxu0 0.0
  %1467 = vmatprep.subr.mxu0 0.0
  %1468 = vmatpush1.msra.mxu0 0.0
  %1469 = vmatprep.subr.mxu0 0.0
  %1470 = vmatpush1.msra.mxu0 0.0
  %1471 = vmatprep.mubr.f32.mxu0 0.0
  %1472 = vmatmul.mubr.f32.gmra.mrb[0].mxu0 %v1401
  %v1473 = vpop.f32.mrb[0].mxu0
  %v1474 = vadd.f32 %v1395, %v1473
  %v1475 = vpop.f32.mrb[0].mxu0
  %1476 = vdwg.mxu0
  %v1477 = vtanh.pop %v1474
  %vm1478 = vcmask 7168
  %1479 = vst.msk [vmem:[%s8] sm:$0xff] %vm1478, %v1477
  // Predicated region
  $region34: #{tpu_custom_call.1} parent=0 // pred_check
    _
  $region35: #{tpu_custom_call.1} parent=0 // pred_check_branch
    %1481 = sbr.rel (0) target = $region37
  $region36: #{tpu_custom_call.1} parent=0 // pred_region
    _
  $region37: #{tpu_custom_call.1} parent=0 // pred_fallthru
    _
  // Predicated region
  $region38: #{tpu_custom_call.1} parent=0 // pred_check
    _
  $region39: #{tpu_custom_call.1} parent=0 // pred_check_branch
    %1483 = sbr.rel (0) target = $region41
  $region40: #{tpu_custom_call.1} parent=0 // pred_region
    _
  $region41: #{tpu_custom_call.1} parent=0 // pred_fallthru
    _

</llo_original>
